<compile_context>
chip_gen: v7x
topology: tpu7x:2x2x1
jax: 0.10.0
libtpu: 0.0.40
codegen_flags: <defaults>
</compile_context>

<pallas_src>
import functools

import jax
import jax.numpy as jnp
from jax.experimental import pallas as pl
from jax.experimental.pallas import tpu as pltpu


def _round_up(x, m):
    return (x + m - 1) // m * m


def _pad2(a, rows, cols):
    """Zero-pad a 2-D array to (rows, cols); no-op (no XLA pad) if already sized."""
    if a.shape == (rows, cols):
        return a
    return jnp.pad(a, ((0, rows - a.shape[0]), (0, cols - a.shape[1])))


def _epilogue(h1_relu_f32, h1bf_ref, w2_ref, b2_ref, kemb_ref, w3_ref, b3_ref,
              out_ref, fusion):
    """Layers 2/3 + fusion + store.  bf16 activations staged in VMEM scratch."""
    # Stage bf16 copy of h1 so the f32 and bf16 versions are not both vreg-live.
    h1bf_ref[...] = h1_relu_f32.astype(jnp.bfloat16)
    h2 = jnp.dot(h1bf_ref[...], w2_ref[...], preferred_element_type=jnp.float32)
    h2 = jnp.maximum(h2 + b2_ref[...], 0.0)                  # ReLU (Dropout = id)

    if fusion == "add":
        fused = kemb_ref[...] + h2
    elif fusion == "multiply":
        fused = kemb_ref[...] * h2
    else:
        raise ValueError("unsupported fusion (only 'add'/'multiply')")

    # Reuse the same bf16 scratch for `fused` (the h1 copy is dead by now).
    h1bf_ref[...] = fused.astype(jnp.bfloat16)
    logits = jnp.dot(h1bf_ref[...], w3_ref[...], preferred_element_type=jnp.float32)
    out_ref[...] = (logits + b3_ref[...]).astype(out_ref.dtype)


def _mlp_omics_resident_kernel(x_ref, w1_ref, b1_ref, w2_ref, b2_ref, kemb_ref,
                               w3_ref, b3_ref, out_ref, h1bf_ref, *, fusion):
    """Single-pass kernel: W1 fully resident in VMEM, grid over batch only."""
    h1 = jnp.dot(x_ref[...], w1_ref[...], preferred_element_type=jnp.float32)
    h1 = jnp.maximum(h1 + b1_ref[...], 0.0)                  # ReLU (Dropout = id)
    _epilogue(h1, h1bf_ref, w2_ref, b2_ref, kemb_ref, w3_ref, b3_ref, out_ref,
              fusion)


def _mlp_omics_kstream_kernel(x_ref, w1_ref, b1_ref, w2_ref, b2_ref, kemb_ref,
                              w3_ref, b3_ref, out_ref, acc_ref, h1bf_ref, *,
                              fusion):
    """K-streamed kernel for omics-scale input_dim: W1 tiled along K."""
    k = pl.program_id(1)

    @pl.when(k == 0)
    def _():
        acc_ref[...] = jnp.zeros_like(acc_ref)

    # Layer-1 partial product: (tb, tk)bf16 @ (tk, Hp)bf16 -> f32 accumulate.
    acc_ref[...] += jnp.dot(x_ref[...], w1_ref[...],
                            preferred_element_type=jnp.float32)

    @pl.when(k == pl.num_programs(1) - 1)
    def _():
        # ReLU written back in place: no extra (tb, Hp) f32 temp live.
        acc_ref[...] = jnp.maximum(acc_ref[...] + b1_ref[...], 0.0)
        _epilogue(acc_ref[...], h1bf_ref, w2_ref, b2_ref, kemb_ref, w3_ref,
                  b3_ref, out_ref, fusion)


def mlp_omics_with_p_forward(data_omics, knowledge_emb, params, fusion="add",
                             *, tb=256, tk=1024,
                             resident_w1_byte_limit=4 * 1024 * 1024):
    """data_omics: (B, input_dim) [bf16 preferred]; knowledge_emb: (1, proj//2)."""
    if fusion not in ("add", "multiply"):
        raise ValueError("unsupported fusion (only 'add'/'multiply')")

    w1, b1, w2, b2, w3, b3 = (params[k] for k in ("w1", "b1", "w2", "b2", "w3", "b3"))
    B, K = data_omics.shape
    hid = w1.shape[1]
    n_classes = w3.shape[1]

    # Lane-friendly padded sizes (padding is all zeros, so extra lanes stay zero
    # through ReLU and both fusion modes; the host-side slice below is exact).
    Hp = _round_up(hid, 128)
    Cp = _round_up(n_classes, 128)
    tb = min(tb, _round_up(B, 8))        # one big batch tile when B <= tb
    Bp = _round_up(B, tb)

    # Path selection: keep W1 fully resident in VMEM when it is small enough.
    resident = _round_up(K, 128) * Hp * 2 <= resident_w1_byte_limit
    Kp = _round_up(K, 128) if resident else _round_up(K, tk)

    # x: pad/cast only if needed (caller should ingest bf16, tk-aligned).
    x_p = _pad2(data_omics, Bp, Kp)
    if x_p.dtype != jnp.bfloat16:
        x_p = x_p.astype(jnp.bfloat16)

    w1_p = _pad2(w1, Kp, Hp).astype(jnp.bfloat16)
    w2_p = _pad2(w2, Hp, Hp).astype(jnp.bfloat16)
    w3_p = _pad2(w3, Hp, Cp).astype(jnp.bfloat16)
    b1_p = _pad2(b1, 1, Hp).astype(jnp.float32)
    b2_p = _pad2(b2, 1, Hp).astype(jnp.float32)
    b3_p = _pad2(b3, 1, Cp).astype(jnp.float32)
    kemb_p = _pad2(knowledge_emb, 1, Hp).astype(jnp.float32)

    if resident:
        grid = (Bp // tb,)
        kernel = functools.partial(_mlp_omics_resident_kernel, fusion=fusion)
        in_specs = [
            pl.BlockSpec((tb, Kp), lambda b: (b, 0)),    # x batch tile
            pl.BlockSpec((Kp, Hp), lambda b: (0, 0)),    # W1 (resident, fetched once)
            pl.BlockSpec((1, Hp), lambda b: (0, 0)),     # b1
            pl.BlockSpec((Hp, Hp), lambda b: (0, 0)),    # W2
            pl.BlockSpec((1, Hp), lambda b: (0, 0)),     # b2
            pl.BlockSpec((1, Hp), lambda b: (0, 0)),     # knowledge emb
            pl.BlockSpec((Hp, Cp), lambda b: (0, 0)),    # W3
            pl.BlockSpec((1, Cp), lambda b: (0, 0)),     # b3
        ]
        out_specs = pl.BlockSpec((tb, Cp), lambda b: (b, 0))
        scratch = [pltpu.VMEM((tb, Hp), jnp.bfloat16)]   # bf16 activation staging
        dimsem = ("parallel",)
    else:
        grid = (Bp // tb, Kp // tk)                      # reduction axis last
        kernel = functools.partial(_mlp_omics_kstream_kernel, fusion=fusion)
        in_specs = [
            pl.BlockSpec((tb, tk), lambda b, k: (b, k)),  # x tile
            pl.BlockSpec((tk, Hp), lambda b, k: (k, 0)),  # W1 tile (K-streamed)
            pl.BlockSpec((1, Hp), lambda b, k: (0, 0)),   # b1
            pl.BlockSpec((Hp, Hp), lambda b, k: (0, 0)),  # W2 (resident)
            pl.BlockSpec((1, Hp), lambda b, k: (0, 0)),   # b2
            pl.BlockSpec((1, Hp), lambda b, k: (0, 0)),   # knowledge emb
            pl.BlockSpec((Hp, Cp), lambda b, k: (0, 0)),  # W3 (resident)
            pl.BlockSpec((1, Cp), lambda b, k: (0, 0)),   # b3
        ]
        out_specs = pl.BlockSpec((tb, Cp), lambda b, k: (b, 0))
        scratch = [pltpu.VMEM((tb, Hp), jnp.float32),     # layer-1 f32 accumulator
                   pltpu.VMEM((tb, Hp), jnp.bfloat16)]    # bf16 activation staging
        dimsem = ("parallel", "arbitrary")

    out = pl.pallas_call(
        kernel,
        out_shape=jax.ShapeDtypeStruct((Bp, Cp), jnp.float32),
        grid_spec=pltpu.PrefetchScalarGridSpec(
            num_scalar_prefetch=0,
            grid=grid,
            in_specs=in_specs,
            out_specs=out_specs,
            scratch_shapes=scratch,
        ),
        compiler_params=pltpu.CompilerParams(dimension_semantics=dimsem),
    )(x_p, w1_p, b1_p, w2_p, b2_p, kemb_p, w3_p, b3_p)

    return out[:B, :n_classes]


def init_params(key, input_dim, projection_dim, n_classes):
    """Deterministic init mimicking PyTorch Linear (U[-1/sqrt(fan_in), +])."""
    hid = projection_dim // 2
    ks = jax.random.split(key, 6)

    def lin(kw, kb, fan_in, fan_out):
        bound = 1.0 / jnp.sqrt(jnp.float32(fan_in))
        w = jax.random.uniform(kw, (fan_in, fan_out), jnp.float32, -bound, bound)
        b = jax.random.uniform(kb, (1, fan_out), jnp.float32, -bound, bound)
        return w, b

    w1, b1 = lin(ks[0], ks[1], input_dim, hid)
    w2, b2 = lin(ks[2], ks[3], hid, hid)
    w3, b3 = lin(ks[4], ks[5], hid, n_classes)
    return dict(w1=w1, b1=b1, w2=w2, b2=b2, w3=w3, b3=b3)


def reference_forward(data_omics, knowledge_emb, params, fusion="add"):
    """Pure-JAX reference mirroring the kernel's bf16-in / f32-accumulate math."""
    bf = jnp.bfloat16
    dot = lambda a, b: jnp.dot(a.astype(bf), b.astype(bf),
                               preferred_element_type=jnp.float32)
    h1 = jnp.maximum(dot(data_omics, params["w1"]) + params["b1"], 0.0)
    h2 = jnp.maximum(dot(h1, params["w2"]) + params["b2"], 0.0)
    fused = knowledge_emb + h2 if fusion == "add" else knowledge_emb * h2
    return dot(fused, params["w3"]) + params["b3"]


if __name__ == "__main__":
    batch = 256              # whole batch fits one tb=256 tile -> W1 fetched once
    input_dim = 512          # small enough -> fully-resident path, no K grid axis
    projection_dim = 512     # PyTorch default -> hidden = 256 (lane-aligned)
    n_classes = 4            # padded to 128 lanes inside the kernel

    key = jax.random.PRNGKey(0)
    k_x, k_k, k_p = jax.random.split(key, 3)

    data_omics = jax.random.normal(k_x, (batch, input_dim), jnp.float32)
    # synthetic deterministic CPKS knowledge embedding (see TODO above)
    knowledge_emb = jax.random.normal(k_k, (1, projection_dim // 2), jnp.float32)
    params = init_params(k_p, input_dim, projection_dim, n_classes)

    # Ingest omics features as bf16 up front (perf review: avoids a per-call
    # XLA pad+cast pass over the largest activation inside the wrapper).
    data_omics_bf16 = data_omics.astype(jnp.bfloat16)

    logits = mlp_omics_with_p_forward(data_omics_bf16, knowledge_emb, params,
                                      fusion="add")
    logits = jax.block_until_ready(logits)

    ref = reference_forward(data_omics, knowledge_emb, params, fusion="add")
    assert logits.shape == (batch, n_classes)
    err = float(jnp.max(jnp.abs(logits - ref)))
    assert jnp.allclose(logits, ref, atol=1e-3, rtol=1e-3), err
    print("KERNEL_OK")
</pallas_src>

<mosaic_0001>
module attributes {stable_mosaic.version = 11 : i64} {
  func.func @_mlp_omics_resident_kernel(%arg0: i32, %arg1: memref<256x512xbf16, #tpu.memory_space<vmem>>, %arg2: memref<512x256xbf16, #tpu.memory_space<vmem>>, %arg3: memref<1x256xf32, #tpu.memory_space<vmem>>, %arg4: memref<256x256xbf16, #tpu.memory_space<vmem>>, %arg5: memref<1x256xf32, #tpu.memory_space<vmem>>, %arg6: memref<1x256xf32, #tpu.memory_space<vmem>>, %arg7: memref<256x128xbf16, #tpu.memory_space<vmem>>, %arg8: memref<1x128xf32, #tpu.memory_space<vmem>>, %arg9: memref<256x128xf32, #tpu.memory_space<vmem>>, %arg10: memref<256x256xbf16, #tpu.memory_space<vmem>>) attributes {dimension_semantics = [#tpu.dimension_semantics<parallel>], iteration_bounds = array<i64: 1>, scalar_prefetch = 0 : i64, scratch_operands = 1 : i64, tpu.core_type = #tpu.core_type<tc>, window_params = [{transform_indices = @transform_0, window_bounds = array<i64: 256, 512>}, {pipeline_mode = #tpu.pipeline_mode<synchronous>, transform_indices = @transform_1, window_bounds = array<i64: 512, 256>}, {pipeline_mode = #tpu.pipeline_mode<synchronous>, transform_indices = @transform_2, window_bounds = array<i64: 1, 256>}, {pipeline_mode = #tpu.pipeline_mode<synchronous>, transform_indices = @transform_3, window_bounds = array<i64: 256, 256>}, {pipeline_mode = #tpu.pipeline_mode<synchronous>, transform_indices = @transform_4, window_bounds = array<i64: 1, 256>}, {pipeline_mode = #tpu.pipeline_mode<synchronous>, transform_indices = @transform_5, window_bounds = array<i64: 1, 256>}, {pipeline_mode = #tpu.pipeline_mode<synchronous>, transform_indices = @transform_6, window_bounds = array<i64: 256, 128>}, {pipeline_mode = #tpu.pipeline_mode<synchronous>, transform_indices = @transform_7, window_bounds = array<i64: 1, 128>}, {transform_indices = @transform_8, window_bounds = array<i64: 256, 128>}]} {
    %c0 = arith.constant 0 : index
    %c0_0 = arith.constant 0 : index
    %0 = vector.load %arg1[%c0, %c0_0] : memref<256x512xbf16, #tpu.memory_space<vmem>>, vector<256x512xbf16>
    %c0_1 = arith.constant 0 : index
    %c0_2 = arith.constant 0 : index
    %1 = vector.load %arg2[%c0_1, %c0_2] : memref<512x256xbf16, #tpu.memory_space<vmem>>, vector<512x256xbf16>
    %cst = arith.constant dense<0.000000e+00> : vector<256x256xf32>
    %2 = tpu.matmul %0, %1, %cst {dimension_numbers = #tpu.dot_dimension_numbers<[1], [0], [0], [1], [0, 0, 1, 1], [], []>} : vector<256x512xbf16>, vector<512x256xbf16>, vector<256x256xf32> -> vector<256x256xf32>
    %c0_3 = arith.constant 0 : index
    %c0_4 = arith.constant 0 : index
    %3 = vector.load %arg3[%c0_3, %c0_4] : memref<1x256xf32, #tpu.memory_space<vmem>>, vector<1x256xf32>
    %4 = vector.broadcast %3 : vector<1x256xf32> to vector<256x256xf32>
    %5 = arith.addf %2, %4 : vector<256x256xf32>
    %cst_5 = arith.constant 0.000000e+00 : f32
    %6 = vector.broadcast %cst_5 : f32 to vector<256x256xf32>
    %7 = arith.maximumf %5, %6 : vector<256x256xf32>
    %8 = arith.truncf %7 : vector<256x256xf32> to vector<256x256xbf16>
    %c0_6 = arith.constant 0 : index
    %c0_7 = arith.constant 0 : index
    %9 = vector.load %arg10[%c0_6, %c0_7] : memref<256x256xbf16, #tpu.memory_space<vmem>>, vector<256x256xbf16>
    tpu.vector_store %arg10[%c0_6, %c0_7], %8 {strides = array<i32>} : memref<256x256xbf16, #tpu.memory_space<vmem>>, vector<256x256xbf16>,
    %c0_8 = arith.constant 0 : index
    %c0_9 = arith.constant 0 : index
    %10 = vector.load %arg10[%c0_8, %c0_9] : memref<256x256xbf16, #tpu.memory_space<vmem>>, vector<256x256xbf16>
    %c0_10 = arith.constant 0 : index
    %c0_11 = arith.constant 0 : index
    %11 = vector.load %arg4[%c0_10, %c0_11] : memref<256x256xbf16, #tpu.memory_space<vmem>>, vector<256x256xbf16>
    %cst_12 = arith.constant dense<0.000000e+00> : vector<256x256xf32>
    %12 = tpu.matmul %10, %11, %cst_12 {dimension_numbers = #tpu.dot_dimension_numbers<[1], [0], [0], [1], [0, 0, 1, 1], [], []>} : vector<256x256xbf16>, vector<256x256xbf16>, vector<256x256xf32> -> vector<256x256xf32>
    %c0_13 = arith.constant 0 : index
    %c0_14 = arith.constant 0 : index
    %13 = vector.load %arg5[%c0_13, %c0_14] : memref<1x256xf32, #tpu.memory_space<vmem>>, vector<1x256xf32>
    %14 = vector.broadcast %13 : vector<1x256xf32> to vector<256x256xf32>
    %15 = arith.addf %12, %14 : vector<256x256xf32>
    %cst_15 = arith.constant 0.000000e+00 : f32
    %16 = vector.broadcast %cst_15 : f32 to vector<256x256xf32>
    %17 = arith.maximumf %15, %16 : vector<256x256xf32>
    %c0_16 = arith.constant 0 : index
    %c0_17 = arith.constant 0 : index
    %18 = vector.load %arg6[%c0_16, %c0_17] : memref<1x256xf32, #tpu.memory_space<vmem>>, vector<1x256xf32>
    %19 = vector.broadcast %18 : vector<1x256xf32> to vector<256x256xf32>
    %20 = arith.addf %19, %17 : vector<256x256xf32>
    %21 = arith.truncf %20 : vector<256x256xf32> to vector<256x256xbf16>
    %c0_18 = arith.constant 0 : index
    %c0_19 = arith.constant 0 : index
    %22 = vector.load %arg10[%c0_18, %c0_19] : memref<256x256xbf16, #tpu.memory_space<vmem>>, vector<256x256xbf16>
    tpu.vector_store %arg10[%c0_18, %c0_19], %21 {strides = array<i32>} : memref<256x256xbf16, #tpu.memory_space<vmem>>, vector<256x256xbf16>,
    %c0_20 = arith.constant 0 : index
    %c0_21 = arith.constant 0 : index
    %23 = vector.load %arg10[%c0_20, %c0_21] : memref<256x256xbf16, #tpu.memory_space<vmem>>, vector<256x256xbf16>
    %c0_22 = arith.constant 0 : index
    %c0_23 = arith.constant 0 : index
    %24 = vector.load %arg7[%c0_22, %c0_23] : memref<256x128xbf16, #tpu.memory_space<vmem>>, vector<256x128xbf16>
    %cst_24 = arith.constant dense<0.000000e+00> : vector<256x128xf32>
    %25 = tpu.matmul %23, %24, %cst_24 {dimension_numbers = #tpu.dot_dimension_numbers<[1], [0], [0], [1], [0, 0, 1, 1], [], []>} : vector<256x256xbf16>, vector<256x128xbf16>, vector<256x128xf32> -> vector<256x128xf32>
    %c0_25 = arith.constant 0 : index
    %c0_26 = arith.constant 0 : index
    %26 = vector.load %arg8[%c0_25, %c0_26] : memref<1x128xf32, #tpu.memory_space<vmem>>, vector<1x128xf32>
    %27 = vector.broadcast %26 : vector<1x128xf32> to vector<256x128xf32>
    %28 = arith.addf %25, %27 : vector<256x128xf32>
    %c0_27 = arith.constant 0 : index
    %c0_28 = arith.constant 0 : index
    %29 = vector.load %arg9[%c0_27, %c0_28] : memref<256x128xf32, #tpu.memory_space<vmem>>, vector<256x128xf32>
    tpu.vector_store %arg9[%c0_27, %c0_28], %28 {strides = array<i32>} : memref<256x128xf32, #tpu.memory_space<vmem>>, vector<256x128xf32>,
    return
  }
  func.func @transform_0(%arg0: i32) -> (i32, i32) {
    %c0_i32 = arith.constant 0 : i32
    %c0_i32_0 = arith.constant 0 : i32
    return %arg0, %c0_i32 : i32, i32
  }
  func.func @transform_1(%arg0: i32) -> (i32, i32) {
    %c0_i32 = arith.constant 0 : i32
    %c0_i32_0 = arith.constant 0 : i32
    %c0_i32_1 = arith.constant 0 : i32
    return %c0_i32, %c0_i32_0 : i32, i32
  }
  func.func @transform_2(%arg0: i32) -> (i32, i32) {
    %c0_i32 = arith.constant 0 : i32
    %c0_i32_0 = arith.constant 0 : i32
    %c0_i32_1 = arith.constant 0 : i32
    return %c0_i32, %c0_i32_0 : i32, i32
  }
  func.func @transform_3(%arg0: i32) -> (i32, i32) {
    %c0_i32 = arith.constant 0 : i32
    %c0_i32_0 = arith.constant 0 : i32
    %c0_i32_1 = arith.constant 0 : i32
    return %c0_i32, %c0_i32_0 : i32, i32
  }
  func.func @transform_4(%arg0: i32) -> (i32, i32) {
    %c0_i32 = arith.constant 0 : i32
    %c0_i32_0 = arith.constant 0 : i32
    %c0_i32_1 = arith.constant 0 : i32
    return %c0_i32, %c0_i32_0 : i32, i32
  }
  func.func @transform_5(%arg0: i32) -> (i32, i32) {
    %c0_i32 = arith.constant 0 : i32
    %c0_i32_0 = arith.constant 0 : i32
    %c0_i32_1 = arith.constant 0 : i32
    return %c0_i32, %c0_i32_0 : i32, i32
  }
  func.func @transform_6(%arg0: i32) -> (i32, i32) {
    %c0_i32 = arith.constant 0 : i32
    %c0_i32_0 = arith.constant 0 : i32
    %c0_i32_1 = arith.constant 0 : i32
    return %c0_i32, %c0_i32_0 : i32, i32
  }
  func.func @transform_7(%arg0: i32) -> (i32, i32) {
    %c0_i32 = arith.constant 0 : i32
    %c0_i32_0 = arith.constant 0 : i32
    %c0_i32_1 = arith.constant 0 : i32
    return %c0_i32, %c0_i32_0 : i32, i32
  }
  func.func @transform_8(%arg0: i32) -> (i32, i32) {
    %c0_i32 = arith.constant 0 : i32
    %c0_i32_0 = arith.constant 0 : i32
    return %arg0, %c0_i32 : i32, i32
  }
}

</mosaic_0001>

<llo_original>
// kernel: tpu_custom_call.1
$region0: #{tpu_custom_call.1}
  #allocation0 [shape = 'u32[]', space=smem, size = 0x4, offset = 0x4, fixed_abs, tag = 'smem constant byte address 0x4 - core index']
  #allocation1 [shape = 'u32[144,128]{1,0:T(1,128)}', space=vmem, size = 0x12000, scoped, tag = 'internal scratch']
  #allocation2 [shape = 'bf16[256,256]{1,0:T(16,128)(2,1)}', space=vmem, size = 0x20000, scoped, tag = 'scratch operand']
  %s0 = inlined_call_operand.hbm [shape: bf16[256,512], index: 0, kind: input, shape index: {}]
  %s1 = inlined_call_operand.hbm [shape: bf16[512,256], index: 1, kind: input, shape index: {}]
  %s2 = inlined_call_operand.vmem [shape: f32[1,256], index: 2, kind: input, shape index: {}]
  %s3 = inlined_call_operand.hbm [shape: bf16[256,256], index: 3, kind: input, shape index: {}]
  %s4 = inlined_call_operand.vmem [shape: f32[1,256], index: 4, kind: input, shape index: {}]
  %s5 = inlined_call_operand.vmem [shape: f32[1,256], index: 5, kind: input, shape index: {}]
  %s6 = inlined_call_operand.hbm [shape: bf16[256,128], index: 6, kind: input, shape index: {}]
  %s7 = inlined_call_operand.vmem [shape: f32[1,128], index: 7, kind: input, shape index: {}]
  %s8 = inlined_call_operand.hbm [shape: f32[256,128], index: 8, kind: output, shape index: {}]
  %s9 = sld [smem:[#allocation0]]
  $region58: #{tpu_custom_call.1} parent=0
    _
  %s11 = ssub.s32 1, %s9
  %s12 = scalar_select 0, %s11, %s9
  $region1: #{tpu_custom_call.1} parent=0
    #allocation3 [shape = 'u8[262144]{0}', space=vmem, size = 0x40000, scoped, tag = 'input window, operand 0, single buffered']
    #allocation4 [shape = 's32[1]{0}', space=sflag, size = 0x4, scoped, tag = 'scoped memory for tpu_custom_call.1']
    #allocation5 [shape = 's32[1]{0}', space=sflag, size = 0x4, scoped, tag = 'scoped memory for tpu_custom_call.1']
    #allocation6 [shape = 'u8[262144]{0}', space=vmem, size = 0x40000, scoped, tag = 'input window, operand 1, single buffered']
    #allocation7 [shape = 's32[1]{0}', space=sflag, size = 0x4, scoped, tag = 'scoped memory for tpu_custom_call.1']
    #allocation8 [shape = 'u8[131072]{0}', space=vmem, size = 0x20000, scoped, tag = 'input window, operand 3, single buffered']
    #allocation9 [shape = 'u8[65536]{0}', space=vmem, size = 0x10000, scoped, tag = 'input window, operand 6, single buffered']
    #allocation10 [shape = 's32[1]{0}', space=sflag, size = 0x4, scoped, tag = 'scoped memory for tpu_custom_call.1']
    #allocation11 [shape = 'u8[131072]{0}', space=vmem, size = 0x20000, scoped, tag = 'output window, operand 0, single buffered']
    %13 = vsyncpa [#allocation4], 0
    %14 = vsyncpa [#allocation7], 0
    %15 = vsyncpa [#allocation10], 0
    %16 = vsyncpa [#allocation5], 0
    // Predicated region
    $region2: #{tpu_custom_call.1} parent=1 // pred_check
      _
    $region3: #{tpu_custom_call.1} parent=1 // pred_check_branch
      %18 = sbr.rel (0) target = $region5
    $region4: #{tpu_custom_call.1} parent=1 // pred_region
      %s20 = ssub.s32 8192, 8192
      %21 = vsyncadd [#allocation4], %s20
      %s22 = sshll.u32 [#allocation3], 4
      %s23 = int_to_ptr.vmem [resolvable:$true] %s22
      %28 = dma.hbm_to_vmem [thread:$0]  %s0, 8192, %s23, [#allocation4], 256, 256, 16
    $region5: #{tpu_custom_call.1} parent=1 // pred_fallthru
      _
    // Predicated region
    $region6: #{tpu_custom_call.1} parent=1 // pred_check
      _
    $region7: #{tpu_custom_call.1} parent=1 // pred_check_branch
      %30 = sbr.rel (0) target = $region9
    $region8: #{tpu_custom_call.1} parent=1 // pred_region
      %s32 = ssub.s32 8192, 8192
      %33 = vsyncadd [#allocation7], %s32
      %s34 = sshll.u32 [#allocation6], 4
      %s35 = int_to_ptr.vmem [resolvable:$true] %s34
      %40 = dma.hbm_to_vmem [thread:$0]  %s1, 8192, %s35, [#allocation7], 128, 128, 8
    $region9: #{tpu_custom_call.1} parent=1 // pred_fallthru
      _
    // Predicated region
    $region10: #{tpu_custom_call.1} parent=1 // pred_check
      _
    $region11: #{tpu_custom_call.1} parent=1 // pred_check_branch
      %42 = sbr.rel (0) target = $region13
    $region12: #{tpu_custom_call.1} parent=1 // pred_region
      _
    $region13: #{tpu_custom_call.1} parent=1 // pred_fallthru
      _
    // Predicated region
    $region14: #{tpu_custom_call.1} parent=1 // pred_check
      _
    $region15: #{tpu_custom_call.1} parent=1 // pred_check_branch
      %44 = sbr.rel (0) target = $region17
    $region16: #{tpu_custom_call.1} parent=1 // pred_region
      %s46 = ssub.s32 4096, 4096
      %47 = vsyncadd [#allocation7], %s46
      %s48 = sshll.u32 [#allocation8], 4
      %s49 = int_to_ptr.vmem [resolvable:$true] %s48
      %54 = dma.hbm_to_vmem [thread:$0]  %s3, 4096, %s49, [#allocation7], 128, 128, 8
    $region17: #{tpu_custom_call.1} parent=1 // pred_fallthru
      _
    // Predicated region
    $region18: #{tpu_custom_call.1} parent=1 // pred_check
      _
    $region19: #{tpu_custom_call.1} parent=1 // pred_check_branch
      %56 = sbr.rel (0) target = $region21
    $region20: #{tpu_custom_call.1} parent=1 // pred_region
      _
    $region21: #{tpu_custom_call.1} parent=1 // pred_fallthru
      _
    // Predicated region
    $region22: #{tpu_custom_call.1} parent=1 // pred_check
      _
    $region23: #{tpu_custom_call.1} parent=1 // pred_check_branch
      %58 = sbr.rel (0) target = $region25
    $region24: #{tpu_custom_call.1} parent=1 // pred_region
      _
    $region25: #{tpu_custom_call.1} parent=1 // pred_fallthru
      _
    // Predicated region
    $region26: #{tpu_custom_call.1} parent=1 // pred_check
      _
    $region27: #{tpu_custom_call.1} parent=1 // pred_check_branch
      %60 = sbr.rel (0) target = $region29
    $region28: #{tpu_custom_call.1} parent=1 // pred_region
      %s62 = ssub.s32 2048, 2048
      %63 = vsyncadd [#allocation10], %s62
      %s64 = sshll.u32 [#allocation9], 4
      %s65 = int_to_ptr.vmem [resolvable:$true] %s64
      %70 = dma.hbm_to_vmem [thread:$0]  %s6, 2048, %s65, [#allocation10], 64, 64, 4
    $region29: #{tpu_custom_call.1} parent=1 // pred_fallthru
      _
    // Predicated region
    $region30: #{tpu_custom_call.1} parent=1 // pred_check
      _
    $region31: #{tpu_custom_call.1} parent=1 // pred_check_branch
      %72 = sbr.rel (0) target = $region33
    $region32: #{tpu_custom_call.1} parent=1 // pred_region
      _
    $region33: #{tpu_custom_call.1} parent=1 // pred_fallthru
      _
    // Predicated region
    $region34: #{tpu_custom_call.1} parent=1 // pred_check
      _
    $region35: #{tpu_custom_call.1} parent=1 // pred_check_branch
      %74 = sbr.rel (0) target = $region37
    $region36: #{tpu_custom_call.1} parent=1 // pred_region
      %75 = dma.done [#allocation4], 8192
    $region37: #{tpu_custom_call.1} parent=1 // pred_fallthru
      _
    // Predicated region
    $region38: #{tpu_custom_call.1} parent=1 // pred_check
      _
    $region39: #{tpu_custom_call.1} parent=1 // pred_check_branch
      %77 = sbr.rel (0) target = $region41
    $region40: #{tpu_custom_call.1} parent=1 // pred_region
      %78 = dma.done [#allocation7], 8192
    $region41: #{tpu_custom_call.1} parent=1 // pred_fallthru
      _
    // Predicated region
    $region42: #{tpu_custom_call.1} parent=1 // pred_check
      _
    $region43: #{tpu_custom_call.1} parent=1 // pred_check_branch
      %80 = sbr.rel (0) target = $region45
    $region44: #{tpu_custom_call.1} parent=1 // pred_region
      %81 = dma.done [#allocation7], 4096
    $region45: #{tpu_custom_call.1} parent=1 // pred_fallthru
      _
    // Predicated region
    $region46: #{tpu_custom_call.1} parent=1 // pred_check
      _
    $region47: #{tpu_custom_call.1} parent=1 // pred_check_branch
      %83 = sbr.rel (0) target = $region49
    $region48: #{tpu_custom_call.1} parent=1 // pred_region
      %84 = dma.done [#allocation10], 2048
    $region49: #{tpu_custom_call.1} parent=1 // pred_fallthru
      _
    %v86 = vld [vmem:[#allocation3] sm:$0xff]
    %v87 = vld [vmem:[#allocation3 + $0x8] sm:$0xff]
    %v88 = vld [vmem:[#allocation3 + $0x10] sm:$0xff]
    %v89 = vld [vmem:[#allocation3 + $0x18] sm:$0xff]
    %v90 = vld [vmem:[#allocation3 + $0x20] sm:$0xff]
    %v91 = vld [vmem:[#allocation3 + $0x28] sm:$0xff]
    %v92 = vld [vmem:[#allocation3 + $0x30] sm:$0xff]
    %v93 = vld [vmem:[#allocation3 + $0x38] sm:$0xff]
    %v94 = vld [vmem:[#allocation3 + $0x40] sm:$0xff]
    %v95 = vld [vmem:[#allocation3 + $0x48] sm:$0xff]
    %v96 = vld [vmem:[#allocation3 + $0x50] sm:$0xff]
    %v97 = vld [vmem:[#allocation3 + $0x58] sm:$0xff]
    %v98 = vld [vmem:[#allocation3 + $0x60] sm:$0xff]
    %v99 = vld [vmem:[#allocation3 + $0x68] sm:$0xff]
    %v100 = vld [vmem:[#allocation3 + $0x70] sm:$0xff]
    %v101 = vld [vmem:[#allocation3 + $0x78] sm:$0xff]
    %v102 = vld [vmem:[#allocation3 + $0x80] sm:$0xff]
    %v103 = vld [vmem:[#allocation3 + $0x88] sm:$0xff]
    %v104 = vld [vmem:[#allocation3 + $0x90] sm:$0xff]
    %v105 = vld [vmem:[#allocation3 + $0x98] sm:$0xff]
    %v106 = vld [vmem:[#allocation3 + $0xa0] sm:$0xff]
    %v107 = vld [vmem:[#allocation3 + $0xa8] sm:$0xff]
    %v108 = vld [vmem:[#allocation3 + $0xb0] sm:$0xff]
    %v109 = vld [vmem:[#allocation3 + $0xb8] sm:$0xff]
    %v110 = vld [vmem:[#allocation3 + $0xc0] sm:$0xff]
    %v111 = vld [vmem:[#allocation3 + $0xc8] sm:$0xff]
    %v112 = vld [vmem:[#allocation3 + $0xd0] sm:$0xff]
    %v113 = vld [vmem:[#allocation3 + $0xd8] sm:$0xff]
    %v114 = vld [vmem:[#allocation3 + $0xe0] sm:$0xff]
    %v115 = vld [vmem:[#allocation3 + $0xe8] sm:$0xff]
    %v116 = vld [vmem:[#allocation3 + $0xf0] sm:$0xff]
    %v117 = vld [vmem:[#allocation3 + $0xf8] sm:$0xff]
    %v118 = vld [vmem:[#allocation3 + $0x100] sm:$0xff]
    %v119 = vld [vmem:[#allocation3 + $0x108] sm:$0xff]
    %v120 = vld [vmem:[#allocation3 + $0x110] sm:$0xff]
    %v121 = vld [vmem:[#allocation3 + $0x118] sm:$0xff]
    %v122 = vld [vmem:[#allocation3 + $0x120] sm:$0xff]
    %v123 = vld [vmem:[#allocation3 + $0x128] sm:$0xff]
    %v124 = vld [vmem:[#allocation3 + $0x130] sm:$0xff]
    %v125 = vld [vmem:[#allocation3 + $0x138] sm:$0xff]
    %v126 = vld [vmem:[#allocation3 + $0x140] sm:$0xff]
    %v127 = vld [vmem:[#allocation3 + $0x148] sm:$0xff]
    %v128 = vld [vmem:[#allocation3 + $0x150] sm:$0xff]
    %v129 = vld [vmem:[#allocation3 + $0x158] sm:$0xff]
    %v130 = vld [vmem:[#allocation3 + $0x160] sm:$0xff]
    %v131 = vld [vmem:[#allocation3 + $0x168] sm:$0xff]
    %v132 = vld [vmem:[#allocation3 + $0x170] sm:$0xff]
    %v133 = vld [vmem:[#allocation3 + $0x178] sm:$0xff]
    %v134 = vld [vmem:[#allocation3 + $0x180] sm:$0xff]
    %v135 = vld [vmem:[#allocation3 + $0x188] sm:$0xff]
    %v136 = vld [vmem:[#allocation3 + $0x190] sm:$0xff]
    %v137 = vld [vmem:[#allocation3 + $0x198] sm:$0xff]
    %v138 = vld [vmem:[#allocation3 + $0x1a0] sm:$0xff]
    %v139 = vld [vmem:[#allocation3 + $0x1a8] sm:$0xff]
    %v140 = vld [vmem:[#allocation3 + $0x1b0] sm:$0xff]
    %v141 = vld [vmem:[#allocation3 + $0x1b8] sm:$0xff]
    %v142 = vld [vmem:[#allocation3 + $0x1c0] sm:$0xff]
    %v143 = vld [vmem:[#allocation3 + $0x1c8] sm:$0xff]
    %v144 = vld [vmem:[#allocation3 + $0x1d0] sm:$0xff]
    %v145 = vld [vmem:[#allocation3 + $0x1d8] sm:$0xff]
    %v146 = vld [vmem:[#allocation3 + $0x1e0] sm:$0xff]
    %v147 = vld [vmem:[#allocation3 + $0x1e8] sm:$0xff]
    %v148 = vld [vmem:[#allocation3 + $0x1f0] sm:$0xff]
    %v149 = vld [vmem:[#allocation3 + $0x1f8] sm:$0xff]
    %v150 = vld [vmem:[#allocation6] sm:$0xff]
    %v151 = vld [vmem:[#allocation6 + $0x8] sm:$0xff]
    %v152 = vld [vmem:[#allocation6 + $0x10] sm:$0xff]
    %v153 = vld [vmem:[#allocation6 + $0x18] sm:$0xff]
    %v154 = vld [vmem:[#allocation6 + $0x20] sm:$0xff]
    %v155 = vld [vmem:[#allocation6 + $0x28] sm:$0xff]
    %v156 = vld [vmem:[#allocation6 + $0x30] sm:$0xff]
    %v157 = vld [vmem:[#allocation6 + $0x38] sm:$0xff]
    %v158 = vld [vmem:[#allocation6 + $0x40] sm:$0xff]
    %v159 = vld [vmem:[#allocation6 + $0x48] sm:$0xff]
    %v160 = vld [vmem:[#allocation6 + $0x50] sm:$0xff]
    %v161 = vld [vmem:[#allocation6 + $0x58] sm:$0xff]
    %v162 = vld [vmem:[#allocation6 + $0x60] sm:$0xff]
    %v163 = vld [vmem:[#allocation6 + $0x68] sm:$0xff]
    %v164 = vld [vmem:[#allocation6 + $0x70] sm:$0xff]
    %v165 = vld [vmem:[#allocation6 + $0x78] sm:$0xff]
    %v166 = vld [vmem:[#allocation6 + $0x80] sm:$0xff]
    %v167 = vld [vmem:[#allocation6 + $0x88] sm:$0xff]
    %v168 = vld [vmem:[#allocation6 + $0x90] sm:$0xff]
    %v169 = vld [vmem:[#allocation6 + $0x98] sm:$0xff]
    %v170 = vld [vmem:[#allocation6 + $0xa0] sm:$0xff]
    %v171 = vld [vmem:[#allocation6 + $0xa8] sm:$0xff]
    %v172 = vld [vmem:[#allocation6 + $0xb0] sm:$0xff]
    %v173 = vld [vmem:[#allocation6 + $0xb8] sm:$0xff]
    %v174 = vld [vmem:[#allocation6 + $0xc0] sm:$0xff]
    %v175 = vld [vmem:[#allocation6 + $0xc8] sm:$0xff]
    %v176 = vld [vmem:[#allocation6 + $0xd0] sm:$0xff]
    %v177 = vld [vmem:[#allocation6 + $0xd8] sm:$0xff]
    %v178 = vld [vmem:[#allocation6 + $0xe0] sm:$0xff]
    %v179 = vld [vmem:[#allocation6 + $0xe8] sm:$0xff]
    %v180 = vld [vmem:[#allocation6 + $0xf0] sm:$0xff]
    %v181 = vld [vmem:[#allocation6 + $0xf8] sm:$0xff]
    %v182 = vld [vmem:[#allocation6 + $0x100] sm:$0xff]
    %v183 = vld [vmem:[#allocation6 + $0x108] sm:$0xff]
    %v184 = vld [vmem:[#allocation6 + $0x110] sm:$0xff]
    %v185 = vld [vmem:[#allocation6 + $0x118] sm:$0xff]
    %v186 = vld [vmem:[#allocation6 + $0x120] sm:$0xff]
    %v187 = vld [vmem:[#allocation6 + $0x128] sm:$0xff]
    %v188 = vld [vmem:[#allocation6 + $0x130] sm:$0xff]
    %v189 = vld [vmem:[#allocation6 + $0x138] sm:$0xff]
    %v190 = vld [vmem:[#allocation6 + $0x140] sm:$0xff]
    %v191 = vld [vmem:[#allocation6 + $0x148] sm:$0xff]
    %v192 = vld [vmem:[#allocation6 + $0x150] sm:$0xff]
    %v193 = vld [vmem:[#allocation6 + $0x158] sm:$0xff]
    %v194 = vld [vmem:[#allocation6 + $0x160] sm:$0xff]
    %v195 = vld [vmem:[#allocation6 + $0x168] sm:$0xff]
    %v196 = vld [vmem:[#allocation6 + $0x170] sm:$0xff]
    %v197 = vld [vmem:[#allocation6 + $0x178] sm:$0xff]
    %v198 = vld [vmem:[#allocation6 + $0x180] sm:$0xff]
    %v199 = vld [vmem:[#allocation6 + $0x188] sm:$0xff]
    %v200 = vld [vmem:[#allocation6 + $0x190] sm:$0xff]
    %v201 = vld [vmem:[#allocation6 + $0x198] sm:$0xff]
    %v202 = vld [vmem:[#allocation6 + $0x1a0] sm:$0xff]
    %v203 = vld [vmem:[#allocation6 + $0x1a8] sm:$0xff]
    %v204 = vld [vmem:[#allocation6 + $0x1b0] sm:$0xff]
    %v205 = vld [vmem:[#allocation6 + $0x1b8] sm:$0xff]
    %v206 = vld [vmem:[#allocation6 + $0x1c0] sm:$0xff]
    %v207 = vld [vmem:[#allocation6 + $0x1c8] sm:$0xff]
    %v208 = vld [vmem:[#allocation6 + $0x1d0] sm:$0xff]
    %v209 = vld [vmem:[#allocation6 + $0x1d8] sm:$0xff]
    %v210 = vld [vmem:[#allocation6 + $0x1e0] sm:$0xff]
    %v211 = vld [vmem:[#allocation6 + $0x1e8] sm:$0xff]
    %v212 = vld [vmem:[#allocation6 + $0x1f0] sm:$0xff]
    %v213 = vld [vmem:[#allocation6 + $0x1f8] sm:$0xff]
    %v214 = vld [vmem:[%s2] sm:$0x3]
    %v216 = vlaneseq
    %v217 = vshrl.u32 %v216, 7
    %v218 = vsub.s32 0, %v217
    %v219 = vrot.slane %v214, %v218
    %v220 = vlaneseq
    %v221 = vshrl.u32 %v220, 7
    %v222 = vsub.s32 1, %v221
    %v223 = vrot.slane %v214, %v222
    %v290 = vunpack.c.l.b16 %v86
    %v291 = vunpack.c.h.b16 %v86
    %v292 = vunpack.c.l.b16 %v87
    %v293 = vunpack.c.h.b16 %v87
    %v294 = vunpack.c.l.b16 %v88
    %v295 = vunpack.c.h.b16 %v88
    %v296 = vunpack.c.l.b16 %v89
    %v297 = vunpack.c.h.b16 %v89
    %v298 = vunpack.c.l.b16 %v90
    %v299 = vunpack.c.h.b16 %v90
    %v300 = vunpack.c.l.b16 %v91
    %v301 = vunpack.c.h.b16 %v91
    %v302 = vunpack.c.l.b16 %v92
    %v303 = vunpack.c.h.b16 %v92
    %v304 = vunpack.c.l.b16 %v93
    %v305 = vunpack.c.h.b16 %v93
    %v306 = vunpack.c.l.b16 %v94
    %v307 = vunpack.c.h.b16 %v94
    %v308 = vunpack.c.l.b16 %v95
    %v309 = vunpack.c.h.b16 %v95
    %v310 = vunpack.c.l.b16 %v96
    %v311 = vunpack.c.h.b16 %v96
    %v312 = vunpack.c.l.b16 %v97
    %v313 = vunpack.c.h.b16 %v97
    %v314 = vunpack.c.l.b16 %v98
    %v315 = vunpack.c.h.b16 %v98
    %v316 = vunpack.c.l.b16 %v99
    %v317 = vunpack.c.h.b16 %v99
    %v318 = vunpack.c.l.b16 %v100
    %v319 = vunpack.c.h.b16 %v100
    %v320 = vunpack.c.l.b16 %v101
    %v321 = vunpack.c.h.b16 %v101
    %v322 = vunpack.c.l.b16 %v102
    %v323 = vunpack.c.h.b16 %v102
    %v324 = vunpack.c.l.b16 %v103
    %v325 = vunpack.c.h.b16 %v103
    %v326 = vunpack.c.l.b16 %v104
    %v327 = vunpack.c.h.b16 %v104
    %v328 = vunpack.c.l.b16 %v105
    %v329 = vunpack.c.h.b16 %v105
    %v330 = vunpack.c.l.b16 %v106
    %v331 = vunpack.c.h.b16 %v106
    %v332 = vunpack.c.l.b16 %v107
    %v333 = vunpack.c.h.b16 %v107
    %v334 = vunpack.c.l.b16 %v108
    %v335 = vunpack.c.h.b16 %v108
    %v336 = vunpack.c.l.b16 %v109
    %v337 = vunpack.c.h.b16 %v109
    %v338 = vunpack.c.l.b16 %v110
    %v339 = vunpack.c.h.b16 %v110
    %v340 = vunpack.c.l.b16 %v111
    %v341 = vunpack.c.h.b16 %v111
    %v342 = vunpack.c.l.b16 %v112
    %v343 = vunpack.c.h.b16 %v112
    %v344 = vunpack.c.l.b16 %v113
    %v345 = vunpack.c.h.b16 %v113
    %v346 = vunpack.c.l.b16 %v114
    %v347 = vunpack.c.h.b16 %v114
    %v348 = vunpack.c.l.b16 %v115
    %v349 = vunpack.c.h.b16 %v115
    %v350 = vunpack.c.l.b16 %v116
    %v351 = vunpack.c.h.b16 %v116
    %v352 = vunpack.c.l.b16 %v117
    %v353 = vunpack.c.h.b16 %v117
    %v354 = vunpack.c.l.b16 %v118
    %v355 = vunpack.c.h.b16 %v118
    %v356 = vunpack.c.l.b16 %v119
    %v357 = vunpack.c.h.b16 %v119
    %v358 = vunpack.c.l.b16 %v120
    %v359 = vunpack.c.h.b16 %v120
    %v360 = vunpack.c.l.b16 %v121
    %v361 = vunpack.c.h.b16 %v121
    %v362 = vunpack.c.l.b16 %v122
    %v363 = vunpack.c.h.b16 %v122
    %v364 = vunpack.c.l.b16 %v123
    %v365 = vunpack.c.h.b16 %v123
    %v366 = vunpack.c.l.b16 %v124
    %v367 = vunpack.c.h.b16 %v124
    %v368 = vunpack.c.l.b16 %v125
    %v369 = vunpack.c.h.b16 %v125
    %v370 = vunpack.c.l.b16 %v126
    %v371 = vunpack.c.h.b16 %v126
    %v372 = vunpack.c.l.b16 %v127
    %v373 = vunpack.c.h.b16 %v127
    %v374 = vunpack.c.l.b16 %v128
    %v375 = vunpack.c.h.b16 %v128
    %v376 = vunpack.c.l.b16 %v129
    %v377 = vunpack.c.h.b16 %v129
    %v378 = vunpack.c.l.b16 %v130
    %v379 = vunpack.c.h.b16 %v130
    %v380 = vunpack.c.l.b16 %v131
    %v381 = vunpack.c.h.b16 %v131
    %v382 = vunpack.c.l.b16 %v132
    %v383 = vunpack.c.h.b16 %v132
    %v384 = vunpack.c.l.b16 %v133
    %v385 = vunpack.c.h.b16 %v133
    %v386 = vunpack.c.l.b16 %v134
    %v387 = vunpack.c.h.b16 %v134
    %v388 = vunpack.c.l.b16 %v135
    %v389 = vunpack.c.h.b16 %v135
    %v390 = vunpack.c.l.b16 %v136
    %v391 = vunpack.c.h.b16 %v136
    %v392 = vunpack.c.l.b16 %v137
    %v393 = vunpack.c.h.b16 %v137
    %v394 = vunpack.c.l.b16 %v138
    %v395 = vunpack.c.h.b16 %v138
    %v396 = vunpack.c.l.b16 %v139
    %v397 = vunpack.c.h.b16 %v139
    %v398 = vunpack.c.l.b16 %v140
    %v399 = vunpack.c.h.b16 %v140
    %v400 = vunpack.c.l.b16 %v141
    %v401 = vunpack.c.h.b16 %v141
    %v402 = vunpack.c.l.b16 %v142
    %v403 = vunpack.c.h.b16 %v142
    %v404 = vunpack.c.l.b16 %v143
    %v405 = vunpack.c.h.b16 %v143
    %v406 = vunpack.c.l.b16 %v144
    %v407 = vunpack.c.h.b16 %v144
    %v408 = vunpack.c.l.b16 %v145
    %v409 = vunpack.c.h.b16 %v145
    %v410 = vunpack.c.l.b16 %v146
    %v411 = vunpack.c.h.b16 %v146
    %v412 = vunpack.c.l.b16 %v147
    %v413 = vunpack.c.h.b16 %v147
    %v414 = vunpack.c.l.b16 %v148
    %v415 = vunpack.c.h.b16 %v148
    %v416 = vunpack.c.l.b16 %v149
    %v417 = vunpack.c.h.b16 %v149
    %v418 = vpack.c.b16 %v294, %v290
    %v419 = vpack.c.b16 %v295, %v291
    %v420 = vpack.c.b16 %v296, %v292
    %v421 = vpack.c.b16 %v297, %v293
    %v422 = vpack.c.b16 %v302, %v298
    %v423 = vpack.c.b16 %v303, %v299
    %v424 = vpack.c.b16 %v304, %v300
    %v425 = vpack.c.b16 %v305, %v301
    %v426 = vpack.c.b16 %v310, %v306
    %v427 = vpack.c.b16 %v311, %v307
    %v428 = vpack.c.b16 %v312, %v308
    %v429 = vpack.c.b16 %v313, %v309
    %v430 = vpack.c.b16 %v318, %v314
    %v431 = vpack.c.b16 %v319, %v315
    %v432 = vpack.c.b16 %v320, %v316
    %v433 = vpack.c.b16 %v321, %v317
    %v434 = vpack.c.b16 %v326, %v322
    %v435 = vpack.c.b16 %v327, %v323
    %v436 = vpack.c.b16 %v328, %v324
    %v437 = vpack.c.b16 %v329, %v325
    %v438 = vpack.c.b16 %v334, %v330
    %v439 = vpack.c.b16 %v335, %v331
    %v440 = vpack.c.b16 %v336, %v332
    %v441 = vpack.c.b16 %v337, %v333
    %v442 = vpack.c.b16 %v342, %v338
    %v443 = vpack.c.b16 %v343, %v339
    %v444 = vpack.c.b16 %v344, %v340
    %v445 = vpack.c.b16 %v345, %v341
    %v446 = vpack.c.b16 %v350, %v346
    %v447 = vpack.c.b16 %v351, %v347
    %v448 = vpack.c.b16 %v352, %v348
    %v449 = vpack.c.b16 %v353, %v349
    %v450 = vpack.c.b16 %v358, %v354
    %v451 = vpack.c.b16 %v359, %v355
    %v452 = vpack.c.b16 %v360, %v356
    %v453 = vpack.c.b16 %v361, %v357
    %v454 = vpack.c.b16 %v366, %v362
    %v455 = vpack.c.b16 %v367, %v363
    %v456 = vpack.c.b16 %v368, %v364
    %v457 = vpack.c.b16 %v369, %v365
    %v458 = vpack.c.b16 %v374, %v370
    %v459 = vpack.c.b16 %v375, %v371
    %v460 = vpack.c.b16 %v376, %v372
    %v461 = vpack.c.b16 %v377, %v373
    %v462 = vpack.c.b16 %v382, %v378
    %v463 = vpack.c.b16 %v383, %v379
    %v464 = vpack.c.b16 %v384, %v380
    %v465 = vpack.c.b16 %v385, %v381
    %v466 = vpack.c.b16 %v390, %v386
    %v467 = vpack.c.b16 %v391, %v387
    %v468 = vpack.c.b16 %v392, %v388
    %v469 = vpack.c.b16 %v393, %v389
    %v470 = vpack.c.b16 %v398, %v394
    %v471 = vpack.c.b16 %v399, %v395
    %v472 = vpack.c.b16 %v400, %v396
    %v473 = vpack.c.b16 %v401, %v397
    %v474 = vpack.c.b16 %v406, %v402
    %v475 = vpack.c.b16 %v407, %v403
    %v476 = vpack.c.b16 %v408, %v404
    %v477 = vpack.c.b16 %v409, %v405
    %v478 = vpack.c.b16 %v414, %v410
    %v479 = vpack.c.b16 %v415, %v411
    %v480 = vpack.c.b16 %v416, %v412
    %v481 = vpack.c.b16 %v417, %v413
    %v610 = vunpack.c.l.b16 %v150
    %v611 = vunpack.c.h.b16 %v150
    %v612 = vunpack.c.l.b16 %v151
    %v613 = vunpack.c.h.b16 %v151
    %v614 = vunpack.c.l.b16 %v152
    %v615 = vunpack.c.h.b16 %v152
    %v616 = vunpack.c.l.b16 %v153
    %v617 = vunpack.c.h.b16 %v153
    %v618 = vunpack.c.l.b16 %v154
    %v619 = vunpack.c.h.b16 %v154
    %v620 = vunpack.c.l.b16 %v155
    %v621 = vunpack.c.h.b16 %v155
    %v622 = vunpack.c.l.b16 %v156
    %v623 = vunpack.c.h.b16 %v156
    %v624 = vunpack.c.l.b16 %v157
    %v625 = vunpack.c.h.b16 %v157
    %v626 = vunpack.c.l.b16 %v158
    %v627 = vunpack.c.h.b16 %v158
    %v628 = vunpack.c.l.b16 %v159
    %v629 = vunpack.c.h.b16 %v159
    %v630 = vunpack.c.l.b16 %v160
    %v631 = vunpack.c.h.b16 %v160
    %v632 = vunpack.c.l.b16 %v161
    %v633 = vunpack.c.h.b16 %v161
    %v634 = vunpack.c.l.b16 %v162
    %v635 = vunpack.c.h.b16 %v162
    %v636 = vunpack.c.l.b16 %v163
    %v637 = vunpack.c.h.b16 %v163
    %v638 = vunpack.c.l.b16 %v164
    %v639 = vunpack.c.h.b16 %v164
    %v640 = vunpack.c.l.b16 %v165
    %v641 = vunpack.c.h.b16 %v165
    %v642 = vunpack.c.l.b16 %v166
    %v643 = vunpack.c.h.b16 %v166
    %v644 = vunpack.c.l.b16 %v167
    %v645 = vunpack.c.h.b16 %v167
    %v646 = vunpack.c.l.b16 %v168
    %v647 = vunpack.c.h.b16 %v168
    %v648 = vunpack.c.l.b16 %v169
    %v649 = vunpack.c.h.b16 %v169
    %v650 = vunpack.c.l.b16 %v170
    %v651 = vunpack.c.h.b16 %v170
    %v652 = vunpack.c.l.b16 %v171
    %v653 = vunpack.c.h.b16 %v171
    %v654 = vunpack.c.l.b16 %v172
    %v655 = vunpack.c.h.b16 %v172
    %v656 = vunpack.c.l.b16 %v173
    %v657 = vunpack.c.h.b16 %v173
    %v658 = vunpack.c.l.b16 %v174
    %v659 = vunpack.c.h.b16 %v174
    %v660 = vunpack.c.l.b16 %v175
    %v661 = vunpack.c.h.b16 %v175
    %v662 = vunpack.c.l.b16 %v176
    %v663 = vunpack.c.h.b16 %v176
    %v664 = vunpack.c.l.b16 %v177
    %v665 = vunpack.c.h.b16 %v177
    %v666 = vunpack.c.l.b16 %v178
    %v667 = vunpack.c.h.b16 %v178
    %v668 = vunpack.c.l.b16 %v179
    %v669 = vunpack.c.h.b16 %v179
    %v670 = vunpack.c.l.b16 %v180
    %v671 = vunpack.c.h.b16 %v180
    %v672 = vunpack.c.l.b16 %v181
    %v673 = vunpack.c.h.b16 %v181
    %v674 = vunpack.c.l.b16 %v182
    %v675 = vunpack.c.h.b16 %v182
    %v676 = vunpack.c.l.b16 %v183
    %v677 = vunpack.c.h.b16 %v183
    %v678 = vunpack.c.l.b16 %v184
    %v679 = vunpack.c.h.b16 %v184
    %v680 = vunpack.c.l.b16 %v185
    %v681 = vunpack.c.h.b16 %v185
    %v682 = vunpack.c.l.b16 %v186
    %v683 = vunpack.c.h.b16 %v186
    %v684 = vunpack.c.l.b16 %v187
    %v685 = vunpack.c.h.b16 %v187
    %v686 = vunpack.c.l.b16 %v188
    %v687 = vunpack.c.h.b16 %v188
    %v688 = vunpack.c.l.b16 %v189
    %v689 = vunpack.c.h.b16 %v189
    %v690 = vunpack.c.l.b16 %v190
    %v691 = vunpack.c.h.b16 %v190
    %v692 = vunpack.c.l.b16 %v191
    %v693 = vunpack.c.h.b16 %v191
    %v694 = vunpack.c.l.b16 %v192
    %v695 = vunpack.c.h.b16 %v192
    %v696 = vunpack.c.l.b16 %v193
    %v697 = vunpack.c.h.b16 %v193
    %v698 = vunpack.c.l.b16 %v194
    %v699 = vunpack.c.h.b16 %v194
    %v700 = vunpack.c.l.b16 %v195
    %v701 = vunpack.c.h.b16 %v195
    %v702 = vunpack.c.l.b16 %v196
    %v703 = vunpack.c.h.b16 %v196
    %v704 = vunpack.c.l.b16 %v197
    %v705 = vunpack.c.h.b16 %v197
    %v706 = vunpack.c.l.b16 %v198
    %v707 = vunpack.c.h.b16 %v198
    %v708 = vunpack.c.l.b16 %v199
    %v709 = vunpack.c.h.b16 %v199
    %v710 = vunpack.c.l.b16 %v200
    %v711 = vunpack.c.h.b16 %v200
    %v712 = vunpack.c.l.b16 %v201
    %v713 = vunpack.c.h.b16 %v201
    %v714 = vunpack.c.l.b16 %v202
    %v715 = vunpack.c.h.b16 %v202
    %v716 = vunpack.c.l.b16 %v203
    %v717 = vunpack.c.h.b16 %v203
    %v718 = vunpack.c.l.b16 %v204
    %v719 = vunpack.c.h.b16 %v204
    %v720 = vunpack.c.l.b16 %v205
    %v721 = vunpack.c.h.b16 %v205
    %v722 = vunpack.c.l.b16 %v206
    %v723 = vunpack.c.h.b16 %v206
    %v724 = vunpack.c.l.b16 %v207
    %v725 = vunpack.c.h.b16 %v207
    %v726 = vunpack.c.l.b16 %v208
    %v727 = vunpack.c.h.b16 %v208
    %v728 = vunpack.c.l.b16 %v209
    %v729 = vunpack.c.h.b16 %v209
    %v730 = vunpack.c.l.b16 %v210
    %v731 = vunpack.c.h.b16 %v210
    %v732 = vunpack.c.l.b16 %v211
    %v733 = vunpack.c.h.b16 %v211
    %v734 = vunpack.c.l.b16 %v212
    %v735 = vunpack.c.h.b16 %v212
    %v736 = vunpack.c.l.b16 %v213
    %v737 = vunpack.c.h.b16 %v213
    %v738 = vpack.c.b16 %v612, %v610
    %v739 = vpack.c.b16 %v613, %v611
    %v740 = vpack.c.b16 %v616, %v614
    %v741 = vpack.c.b16 %v617, %v615
    %v742 = vpack.c.b16 %v620, %v618
    %v743 = vpack.c.b16 %v621, %v619
    %v744 = vpack.c.b16 %v624, %v622
    %v745 = vpack.c.b16 %v625, %v623
    %v746 = vpack.c.b16 %v628, %v626
    %v747 = vpack.c.b16 %v629, %v627
    %v748 = vpack.c.b16 %v632, %v630
    %v749 = vpack.c.b16 %v633, %v631
    %v750 = vpack.c.b16 %v636, %v634
    %v751 = vpack.c.b16 %v637, %v635
    %v752 = vpack.c.b16 %v640, %v638
    %v753 = vpack.c.b16 %v641, %v639
    %v754 = vpack.c.b16 %v644, %v642
    %v755 = vpack.c.b16 %v645, %v643
    %v756 = vpack.c.b16 %v648, %v646
    %v757 = vpack.c.b16 %v649, %v647
    %v758 = vpack.c.b16 %v652, %v650
    %v759 = vpack.c.b16 %v653, %v651
    %v760 = vpack.c.b16 %v656, %v654
    %v761 = vpack.c.b16 %v657, %v655
    %v762 = vpack.c.b16 %v660, %v658
    %v763 = vpack.c.b16 %v661, %v659
    %v764 = vpack.c.b16 %v664, %v662
    %v765 = vpack.c.b16 %v665, %v663
    %v766 = vpack.c.b16 %v668, %v666
    %v767 = vpack.c.b16 %v669, %v667
    %v768 = vpack.c.b16 %v672, %v670
    %v769 = vpack.c.b16 %v673, %v671
    %v770 = vpack.c.b16 %v676, %v674
    %v771 = vpack.c.b16 %v677, %v675
    %v772 = vpack.c.b16 %v680, %v678
    %v773 = vpack.c.b16 %v681, %v679
    %v774 = vpack.c.b16 %v684, %v682
    %v775 = vpack.c.b16 %v685, %v683
    %v776 = vpack.c.b16 %v688, %v686
    %v777 = vpack.c.b16 %v689, %v687
    %v778 = vpack.c.b16 %v692, %v690
    %v779 = vpack.c.b16 %v693, %v691
    %v780 = vpack.c.b16 %v696, %v694
    %v781 = vpack.c.b16 %v697, %v695
    %v782 = vpack.c.b16 %v700, %v698
    %v783 = vpack.c.b16 %v701, %v699
    %v784 = vpack.c.b16 %v704, %v702
    %v785 = vpack.c.b16 %v705, %v703
    %v786 = vpack.c.b16 %v708, %v706
    %v787 = vpack.c.b16 %v709, %v707
    %v788 = vpack.c.b16 %v712, %v710
    %v789 = vpack.c.b16 %v713, %v711
    %v790 = vpack.c.b16 %v716, %v714
    %v791 = vpack.c.b16 %v717, %v715
    %v792 = vpack.c.b16 %v720, %v718
    %v793 = vpack.c.b16 %v721, %v719
    %v794 = vpack.c.b16 %v724, %v722
    %v795 = vpack.c.b16 %v725, %v723
    %v796 = vpack.c.b16 %v728, %v726
    %v797 = vpack.c.b16 %v729, %v727
    %v798 = vpack.c.b16 %v732, %v730
    %v799 = vpack.c.b16 %v733, %v731
    %v800 = vpack.c.b16 %v736, %v734
    %v801 = vpack.c.b16 %v737, %v735
    %866 = vmatprep.subr.bf16.mxu0 %v739
    %867 = vmatpush1.bf16.msra.mxu0 %v738
    %868 = vmatprep.subr.bf16.mxu0 %v741
    %869 = vmatpush1.bf16.msra.mxu0 %v740
    %870 = vmatprep.subr.bf16.mxu0 %v743
    %871 = vmatpush1.bf16.msra.mxu0 %v742
    %872 = vmatprep.subr.bf16.mxu0 %v745
    %873 = vmatpush1.bf16.msra.mxu0 %v744
    %874 = vmatprep.subr.bf16.mxu0 %v747
    %875 = vmatpush1.bf16.msra.mxu0 %v746
    %876 = vmatprep.subr.bf16.mxu0 %v749
    %877 = vmatpush1.bf16.msra.mxu0 %v748
    %878 = vmatprep.subr.bf16.mxu0 %v751
    %879 = vmatpush1.bf16.msra.mxu0 %v750
    %880 = vmatprep.subr.bf16.mxu0 %v753
    %881 = vmatpush1.bf16.msra.mxu0 %v752
    %882 = vmatprep.subr.bf16.mxu0 %v755
    %883 = vmatpush1.bf16.msra.mxu0 %v754
    %884 = vmatprep.subr.bf16.mxu0 %v757
    %885 = vmatpush1.bf16.msra.mxu0 %v756
    %886 = vmatprep.subr.bf16.mxu0 %v759
    %887 = vmatpush1.bf16.msra.mxu0 %v758
    %888 = vmatprep.subr.bf16.mxu0 %v761
    %889 = vmatpush1.bf16.msra.mxu0 %v760
    %890 = vmatprep.subr.bf16.mxu0 %v763
    %891 = vmatpush1.bf16.msra.mxu0 %v762
    %892 = vmatprep.subr.bf16.mxu0 %v765
    %893 = vmatpush1.bf16.msra.mxu0 %v764
    %894 = vmatprep.subr.bf16.mxu0 %v767
    %895 = vmatpush1.bf16.msra.mxu0 %v766
    %896 = vmatprep.subr.bf16.mxu0 %v769
    %897 = vmatpush1.bf16.msra.mxu0 %v768
    %898 = vmatprep.mubr.bf16.mxu0 %v419
    %899 = vmatmul.mubr.bf16.gmra.mrb[0].mxu0 %v418
    %v900 = vpop.f32.mrb[0].mxu0
    %v901 = vadd.f32 %v219, %v900
    %v902 = vpop.f32.mrb[0].mxu0
    %v903 = vadd.f32 %v223, %v902
    %v904 = vpop.f32.mrb[0].mxu0
    %v905 = vadd.f32 %v219, %v904
    %v906 = vpop.f32.mrb[0].mxu0
    %v907 = vadd.f32 %v223, %v906
    %908 = vmatprep.mubr.bf16.mxu0 %v423
    %909 = vmatmul.mubr.bf16.gmra.mrb[0].mxu0 %v422
    %v910 = vpop.f32.mrb[0].mxu0
    %v911 = vadd.f32 %v219, %v910
    %v912 = vpop.f32.mrb[0].mxu0
    %v913 = vadd.f32 %v223, %v912
    %v914 = vpop.f32.mrb[0].mxu0
    %v915 = vadd.f32 %v219, %v914
    %v916 = vpop.f32.mrb[0].mxu0
    %v917 = vadd.f32 %v223, %v916
    %918 = vmatprep.mubr.bf16.mxu0 %v427
    %919 = vmatmul.mubr.bf16.gmra.mrb[0].mxu0 %v426
    %v920 = vpop.f32.mrb[0].mxu0
    %v921 = vadd.f32 %v219, %v920
    %v922 = vpop.f32.mrb[0].mxu0
    %v923 = vadd.f32 %v223, %v922
    %v924 = vpop.f32.mrb[0].mxu0
    %v925 = vadd.f32 %v219, %v924
    %v926 = vpop.f32.mrb[0].mxu0
    %v927 = vadd.f32 %v223, %v926
    %928 = vmatprep.mubr.bf16.mxu0 %v431
    %929 = vmatmul.mubr.bf16.gmra.mrb[0].mxu0 %v430
    %v930 = vpop.f32.mrb[0].mxu0
    %v931 = vadd.f32 %v219, %v930
    %v932 = vpop.f32.mrb[0].mxu0
    %v933 = vadd.f32 %v223, %v932
    %v934 = vpop.f32.mrb[0].mxu0
    %v935 = vadd.f32 %v219, %v934
    %v936 = vpop.f32.mrb[0].mxu0
    %v937 = vadd.f32 %v223, %v936
    %938 = vmatprep.mubr.bf16.mxu0 %v435
    %939 = vmatmul.mubr.bf16.gmra.mrb[0].mxu0 %v434
    %v940 = vpop.f32.mrb[0].mxu0
    %v941 = vadd.f32 %v219, %v940
    %v942 = vpop.f32.mrb[0].mxu0
    %v943 = vadd.f32 %v223, %v942
    %v944 = vpop.f32.mrb[0].mxu0
    %v945 = vadd.f32 %v219, %v944
    %v946 = vpop.f32.mrb[0].mxu0
    %v947 = vadd.f32 %v223, %v946
    %948 = vmatprep.mubr.bf16.mxu0 %v439
    %949 = vmatmul.mubr.bf16.gmra.mrb[0].mxu0 %v438
    %v950 = vpop.f32.mrb[0].mxu0
    %v951 = vadd.f32 %v219, %v950
    %v952 = vpop.f32.mrb[0].mxu0
    %v953 = vadd.f32 %v223, %v952
    %v954 = vpop.f32.mrb[0].mxu0
    %v955 = vadd.f32 %v219, %v954
    %v956 = vpop.f32.mrb[0].mxu0
    %v957 = vadd.f32 %v223, %v956
    %958 = vmatprep.mubr.bf16.mxu0 %v443
    %959 = vmatmul.mubr.bf16.gmra.mrb[0].mxu0 %v442
    %v960 = vpop.f32.mrb[0].mxu0
    %v961 = vadd.f32 %v219, %v960
    %v962 = vpop.f32.mrb[0].mxu0
    %v963 = vadd.f32 %v223, %v962
    %v964 = vpop.f32.mrb[0].mxu0
    %v965 = vadd.f32 %v219, %v964
    %v966 = vpop.f32.mrb[0].mxu0
    %v967 = vadd.f32 %v223, %v966
    %968 = vmatprep.mubr.bf16.mxu0 %v447
    %969 = vmatmul.mubr.bf16.gmra.mrb[0].mxu0 %v446
    %v970 = vpop.f32.mrb[0].mxu0
    %v971 = vadd.f32 %v219, %v970
    %v972 = vpop.f32.mrb[0].mxu0
    %v973 = vadd.f32 %v223, %v972
    %v974 = vpop.f32.mrb[0].mxu0
    %v975 = vadd.f32 %v219, %v974
    %v976 = vpop.f32.mrb[0].mxu0
    %v977 = vadd.f32 %v223, %v976
    %978 = vmatprep.mubr.bf16.mxu0 %v451
    %979 = vmatmul.mubr.bf16.gmra.mrb[0].mxu0 %v450
    %v980 = vpop.f32.mrb[0].mxu0
    %v981 = vadd.f32 %v219, %v980
    %v982 = vpop.f32.mrb[0].mxu0
    %v983 = vadd.f32 %v223, %v982
    %v984 = vpop.f32.mrb[0].mxu0
    %v985 = vadd.f32 %v219, %v984
    %v986 = vpop.f32.mrb[0].mxu0
    %v987 = vadd.f32 %v223, %v986
    %988 = vmatprep.mubr.bf16.mxu0 %v455
    %989 = vmatmul.mubr.bf16.gmra.mrb[0].mxu0 %v454
    %v990 = vpop.f32.mrb[0].mxu0
    %v991 = vadd.f32 %v219, %v990
    %v992 = vpop.f32.mrb[0].mxu0
    %v993 = vadd.f32 %v223, %v992
    %v994 = vpop.f32.mrb[0].mxu0
    %v995 = vadd.f32 %v219, %v994
    %v996 = vpop.f32.mrb[0].mxu0
    %v997 = vadd.f32 %v223, %v996
    %998 = vmatprep.mubr.bf16.mxu0 %v459
    %999 = vmatmul.mubr.bf16.gmra.mrb[0].mxu0 %v458
    %v1000 = vpop.f32.mrb[0].mxu0
    %v1001 = vadd.f32 %v219, %v1000
    %v1002 = vpop.f32.mrb[0].mxu0
    %v1003 = vadd.f32 %v223, %v1002
    %v1004 = vpop.f32.mrb[0].mxu0
    %v1005 = vadd.f32 %v219, %v1004
    %v1006 = vpop.f32.mrb[0].mxu0
    %v1007 = vadd.f32 %v223, %v1006
    %1008 = vmatprep.mubr.bf16.mxu0 %v463
    %1009 = vmatmul.mubr.bf16.gmra.mrb[0].mxu0 %v462
    %v1010 = vpop.f32.mrb[0].mxu0
    %v1011 = vadd.f32 %v219, %v1010
    %v1012 = vpop.f32.mrb[0].mxu0
    %v1013 = vadd.f32 %v223, %v1012
    %v1014 = vpop.f32.mrb[0].mxu0
    %v1015 = vadd.f32 %v219, %v1014
    %v1016 = vpop.f32.mrb[0].mxu0
    %v1017 = vadd.f32 %v223, %v1016
    %1018 = vmatprep.mubr.bf16.mxu0 %v467
    %1019 = vmatmul.mubr.bf16.gmra.mrb[0].mxu0 %v466
    %v1020 = vpop.f32.mrb[0].mxu0
    %v1021 = vadd.f32 %v219, %v1020
    %v1022 = vpop.f32.mrb[0].mxu0
    %v1023 = vadd.f32 %v223, %v1022
    %v1024 = vpop.f32.mrb[0].mxu0
    %v1025 = vadd.f32 %v219, %v1024
    %v1026 = vpop.f32.mrb[0].mxu0
    %v1027 = vadd.f32 %v223, %v1026
    %1028 = vmatprep.mubr.bf16.mxu0 %v471
    %1029 = vmatmul.mubr.bf16.gmra.mrb[0].mxu0 %v470
    %v1030 = vpop.f32.mrb[0].mxu0
    %v1031 = vadd.f32 %v219, %v1030
    %v1032 = vpop.f32.mrb[0].mxu0
    %v1033 = vadd.f32 %v223, %v1032
    %v1034 = vpop.f32.mrb[0].mxu0
    %v1035 = vadd.f32 %v219, %v1034
    %v1036 = vpop.f32.mrb[0].mxu0
    %v1037 = vadd.f32 %v223, %v1036
    %1038 = vmatprep.mubr.bf16.mxu0 %v475
    %1039 = vmatmul.mubr.bf16.gmra.mrb[0].mxu0 %v474
    %v1040 = vpop.f32.mrb[0].mxu0
    %v1041 = vadd.f32 %v219, %v1040
    %v1042 = vpop.f32.mrb[0].mxu0
    %v1043 = vadd.f32 %v223, %v1042
    %v1044 = vpop.f32.mrb[0].mxu0
    %v1045 = vadd.f32 %v219, %v1044
    %v1046 = vpop.f32.mrb[0].mxu0
    %v1047 = vadd.f32 %v223, %v1046
    %1048 = vmatprep.mubr.bf16.mxu0 %v479
    %1049 = vmatmul.mubr.bf16.gmra.mrb[0].mxu0 %v478
    %v1050 = vpop.f32.mrb[0].mxu0
    %v1051 = vadd.f32 %v219, %v1050
    %v1052 = vpop.f32.mrb[0].mxu0
    %v1053 = vadd.f32 %v223, %v1052
    %v1054 = vpop.f32.mrb[0].mxu0
    %v1055 = vadd.f32 %v219, %v1054
    %v1056 = vpop.f32.mrb[0].mxu0
    %v1057 = vadd.f32 %v223, %v1056
    %1058 = vdwg.mxu0
    %1059 = vmatprep.subr.bf16.mxu0 %v771
    %1060 = vmatpush1.bf16.msra.mxu0 %v770
    %1061 = vmatprep.subr.bf16.mxu0 %v773
    %1062 = vmatpush1.bf16.msra.mxu0 %v772
    %1063 = vmatprep.subr.bf16.mxu0 %v775
    %1064 = vmatpush1.bf16.msra.mxu0 %v774
    %1065 = vmatprep.subr.bf16.mxu0 %v777
    %1066 = vmatpush1.bf16.msra.mxu0 %v776
    %1067 = vmatprep.subr.bf16.mxu0 %v779
    %1068 = vmatpush1.bf16.msra.mxu0 %v778
    %1069 = vmatprep.subr.bf16.mxu0 %v781
    %1070 = vmatpush1.bf16.msra.mxu0 %v780
    %1071 = vmatprep.subr.bf16.mxu0 %v783
    %1072 = vmatpush1.bf16.msra.mxu0 %v782
    %1073 = vmatprep.subr.bf16.mxu0 %v785
    %1074 = vmatpush1.bf16.msra.mxu0 %v784
    %1075 = vmatprep.subr.bf16.mxu0 %v787
    %1076 = vmatpush1.bf16.msra.mxu0 %v786
    %1077 = vmatprep.subr.bf16.mxu0 %v789
    %1078 = vmatpush1.bf16.msra.mxu0 %v788
    %1079 = vmatprep.subr.bf16.mxu0 %v791
    %1080 = vmatpush1.bf16.msra.mxu0 %v790
    %1081 = vmatprep.subr.bf16.mxu0 %v793
    %1082 = vmatpush1.bf16.msra.mxu0 %v792
    %1083 = vmatprep.subr.bf16.mxu0 %v795
    %1084 = vmatpush1.bf16.msra.mxu0 %v794
    %1085 = vmatprep.subr.bf16.mxu0 %v797
    %1086 = vmatpush1.bf16.msra.mxu0 %v796
    %1087 = vmatprep.subr.bf16.mxu0 %v799
    %1088 = vmatpush1.bf16.msra.mxu0 %v798
    %1089 = vmatprep.subr.bf16.mxu0 %v801
    %1090 = vmatpush1.bf16.msra.mxu0 %v800
    %1091 = vmatprep.mubr.bf16.mxu0 %v421
    %1092 = vmatmul.mubr.bf16.gmra.mrb[0].mxu0 %v420
    %v1093 = vpop.f32.mrb[0].mxu0
    %v1094 = vadd.f32 %v901, %v1093
    %v1095 = vpop.f32.mrb[0].mxu0
    %v1096 = vadd.f32 %v903, %v1095
    %v1097 = vpop.f32.mrb[0].mxu0
    %v1098 = vadd.f32 %v905, %v1097
    %v1099 = vpop.f32.mrb[0].mxu0
    %v1100 = vadd.f32 %v907, %v1099
    %1101 = vmatprep.mubr.bf16.mxu0 %v425
    %1102 = vmatmul.mubr.bf16.gmra.mrb[0].mxu0 %v424
    %v1103 = vpop.f32.mrb[0].mxu0
    %v1104 = vadd.f32 %v911, %v1103
    %v1105 = vpop.f32.mrb[0].mxu0
    %v1106 = vadd.f32 %v913, %v1105
    %v1107 = vpop.f32.mrb[0].mxu0
    %v1108 = vadd.f32 %v915, %v1107
    %v1109 = vpop.f32.mrb[0].mxu0
    %v1110 = vadd.f32 %v917, %v1109
    %1111 = vmatprep.mubr.bf16.mxu0 %v429
    %1112 = vmatmul.mubr.bf16.gmra.mrb[0].mxu0 %v428
    %v1113 = vpop.f32.mrb[0].mxu0
    %v1114 = vadd.f32 %v921, %v1113
    %v1115 = vpop.f32.mrb[0].mxu0
    %v1116 = vadd.f32 %v923, %v1115
    %v1117 = vpop.f32.mrb[0].mxu0
    %v1118 = vadd.f32 %v925, %v1117
    %v1119 = vpop.f32.mrb[0].mxu0
    %v1120 = vadd.f32 %v927, %v1119
    %1121 = vmatprep.mubr.bf16.mxu0 %v433
    %1122 = vmatmul.mubr.bf16.gmra.mrb[0].mxu0 %v432
    %v1123 = vpop.f32.mrb[0].mxu0
    %v1124 = vadd.f32 %v931, %v1123
    %v1125 = vpop.f32.mrb[0].mxu0
    %v1126 = vadd.f32 %v933, %v1125
    %v1127 = vpop.f32.mrb[0].mxu0
    %v1128 = vadd.f32 %v935, %v1127
    %v1129 = vpop.f32.mrb[0].mxu0
    %v1130 = vadd.f32 %v937, %v1129
    %1131 = vmatprep.mubr.bf16.mxu0 %v437
    %1132 = vmatmul.mubr.bf16.gmra.mrb[0].mxu0 %v436
    %v1133 = vpop.f32.mrb[0].mxu0
    %v1134 = vadd.f32 %v941, %v1133
    %v1135 = vpop.f32.mrb[0].mxu0
    %v1136 = vadd.f32 %v943, %v1135
    %v1137 = vpop.f32.mrb[0].mxu0
    %v1138 = vadd.f32 %v945, %v1137
    %v1139 = vpop.f32.mrb[0].mxu0
    %v1140 = vadd.f32 %v947, %v1139
    %1141 = vmatprep.mubr.bf16.mxu0 %v441
    %1142 = vmatmul.mubr.bf16.gmra.mrb[0].mxu0 %v440
    %v1143 = vpop.f32.mrb[0].mxu0
    %v1144 = vadd.f32 %v951, %v1143
    %v1145 = vpop.f32.mrb[0].mxu0
    %v1146 = vadd.f32 %v953, %v1145
    %v1147 = vpop.f32.mrb[0].mxu0
    %v1148 = vadd.f32 %v955, %v1147
    %v1149 = vpop.f32.mrb[0].mxu0
    %v1150 = vadd.f32 %v957, %v1149
    %1151 = vmatprep.mubr.bf16.mxu0 %v445
    %1152 = vmatmul.mubr.bf16.gmra.mrb[0].mxu0 %v444
    %v1153 = vpop.f32.mrb[0].mxu0
    %v1154 = vadd.f32 %v961, %v1153
    %v1155 = vpop.f32.mrb[0].mxu0
    %v1156 = vadd.f32 %v963, %v1155
    %v1157 = vpop.f32.mrb[0].mxu0
    %v1158 = vadd.f32 %v965, %v1157
    %v1159 = vpop.f32.mrb[0].mxu0
    %v1160 = vadd.f32 %v967, %v1159
    %1161 = vmatprep.mubr.bf16.mxu0 %v449
    %1162 = vmatmul.mubr.bf16.gmra.mrb[0].mxu0 %v448
    %v1163 = vpop.f32.mrb[0].mxu0
    %v1164 = vadd.f32 %v971, %v1163
    %v1165 = vpop.f32.mrb[0].mxu0
    %v1166 = vadd.f32 %v973, %v1165
    %v1167 = vpop.f32.mrb[0].mxu0
    %v1168 = vadd.f32 %v975, %v1167
    %v1169 = vpop.f32.mrb[0].mxu0
    %v1170 = vadd.f32 %v977, %v1169
    %1171 = vmatprep.mubr.bf16.mxu0 %v453
    %1172 = vmatmul.mubr.bf16.gmra.mrb[0].mxu0 %v452
    %v1173 = vpop.f32.mrb[0].mxu0
    %v1174 = vadd.f32 %v981, %v1173
    %v1175 = vpop.f32.mrb[0].mxu0
    %v1176 = vadd.f32 %v983, %v1175
    %v1177 = vpop.f32.mrb[0].mxu0
    %v1178 = vadd.f32 %v985, %v1177
    %v1179 = vpop.f32.mrb[0].mxu0
    %v1180 = vadd.f32 %v987, %v1179
    %1181 = vmatprep.mubr.bf16.mxu0 %v457
    %1182 = vmatmul.mubr.bf16.gmra.mrb[0].mxu0 %v456
    %v1183 = vpop.f32.mrb[0].mxu0
    %v1184 = vadd.f32 %v991, %v1183
    %v1185 = vpop.f32.mrb[0].mxu0
    %v1186 = vadd.f32 %v993, %v1185
    %v1187 = vpop.f32.mrb[0].mxu0
    %v1188 = vadd.f32 %v995, %v1187
    %v1189 = vpop.f32.mrb[0].mxu0
    %v1190 = vadd.f32 %v997, %v1189
    %1191 = vmatprep.mubr.bf16.mxu0 %v461
    %1192 = vmatmul.mubr.bf16.gmra.mrb[0].mxu0 %v460
    %v1193 = vpop.f32.mrb[0].mxu0
    %v1194 = vadd.f32 %v1001, %v1193
    %v1195 = vpop.f32.mrb[0].mxu0
    %v1196 = vadd.f32 %v1003, %v1195
    %v1197 = vpop.f32.mrb[0].mxu0
    %v1198 = vadd.f32 %v1005, %v1197
    %v1199 = vpop.f32.mrb[0].mxu0
    %v1200 = vadd.f32 %v1007, %v1199
    %1201 = vmatprep.mubr.bf16.mxu0 %v465
    %1202 = vmatmul.mubr.bf16.gmra.mrb[0].mxu0 %v464
    %v1203 = vpop.f32.mrb[0].mxu0
    %v1204 = vadd.f32 %v1011, %v1203
    %v1205 = vpop.f32.mrb[0].mxu0
    %v1206 = vadd.f32 %v1013, %v1205
    %v1207 = vpop.f32.mrb[0].mxu0
    %v1208 = vadd.f32 %v1015, %v1207
    %v1209 = vpop.f32.mrb[0].mxu0
    %v1210 = vadd.f32 %v1017, %v1209
    %1211 = vmatprep.mubr.bf16.mxu0 %v469
    %1212 = vmatmul.mubr.bf16.gmra.mrb[0].mxu0 %v468
    %v1213 = vpop.f32.mrb[0].mxu0
    %v1214 = vadd.f32 %v1021, %v1213
    %v1215 = vpop.f32.mrb[0].mxu0
    %v1216 = vadd.f32 %v1023, %v1215
    %v1217 = vpop.f32.mrb[0].mxu0
    %v1218 = vadd.f32 %v1025, %v1217
    %v1219 = vpop.f32.mrb[0].mxu0
    %v1220 = vadd.f32 %v1027, %v1219
    %1221 = vmatprep.mubr.bf16.mxu0 %v473
    %1222 = vmatmul.mubr.bf16.gmra.mrb[0].mxu0 %v472
    %v1223 = vpop.f32.mrb[0].mxu0
    %v1224 = vadd.f32 %v1031, %v1223
    %v1225 = vpop.f32.mrb[0].mxu0
    %v1226 = vadd.f32 %v1033, %v1225
    %v1227 = vpop.f32.mrb[0].mxu0
    %v1228 = vadd.f32 %v1035, %v1227
    %v1229 = vpop.f32.mrb[0].mxu0
    %v1230 = vadd.f32 %v1037, %v1229
    %1231 = vmatprep.mubr.bf16.mxu0 %v477
    %1232 = vmatmul.mubr.bf16.gmra.mrb[0].mxu0 %v476
    %v1233 = vpop.f32.mrb[0].mxu0
    %v1234 = vadd.f32 %v1041, %v1233
    %v1235 = vpop.f32.mrb[0].mxu0
    %v1236 = vadd.f32 %v1043, %v1235
    %v1237 = vpop.f32.mrb[0].mxu0
    %v1238 = vadd.f32 %v1045, %v1237
    %v1239 = vpop.f32.mrb[0].mxu0
    %v1240 = vadd.f32 %v1047, %v1239
    %1241 = vmatprep.mubr.bf16.mxu0 %v481
    %1242 = vmatmul.mubr.bf16.gmra.mrb[0].mxu0 %v480
    %v1243 = vpop.f32.mrb[0].mxu0
    %v1244 = vadd.f32 %v1051, %v1243
    %v1245 = vpop.f32.mrb[0].mxu0
    %v1246 = vadd.f32 %v1053, %v1245
    %v1247 = vpop.f32.mrb[0].mxu0
    %v1248 = vadd.f32 %v1055, %v1247
    %v1249 = vpop.f32.mrb[0].mxu0
    %v1250 = vadd.f32 %v1057, %v1249
    %1251 = vdwg.mxu0
    %v1252 = vmax.f32 %v1094, 0.0
    %v1253 = vmax.f32 %v1096, 0.0
    %v1254 = vmax.f32 %v1098, 0.0
    %v1255 = vmax.f32 %v1100, 0.0
    %v1256 = vmax.f32 %v1104, 0.0
    %v1257 = vmax.f32 %v1106, 0.0
    %v1258 = vmax.f32 %v1108, 0.0
    %v1259 = vmax.f32 %v1110, 0.0
    %v1260 = vmax.f32 %v1114, 0.0
    %v1261 = vmax.f32 %v1116, 0.0
    %v1262 = vmax.f32 %v1118, 0.0
    %v1263 = vmax.f32 %v1120, 0.0
    %v1264 = vmax.f32 %v1124, 0.0
    %v1265 = vmax.f32 %v1126, 0.0
    %v1266 = vmax.f32 %v1128, 0.0
    %v1267 = vmax.f32 %v1130, 0.0
    %v1268 = vmax.f32 %v1134, 0.0
    %v1269 = vmax.f32 %v1136, 0.0
    %v1270 = vmax.f32 %v1138, 0.0
    %v1271 = vmax.f32 %v1140, 0.0
    %v1272 = vmax.f32 %v1144, 0.0
    %v1273 = vmax.f32 %v1146, 0.0
    %v1274 = vmax.f32 %v1148, 0.0
    %v1275 = vmax.f32 %v1150, 0.0
    %v1276 = vmax.f32 %v1154, 0.0
    %v1277 = vmax.f32 %v1156, 0.0
    %v1278 = vmax.f32 %v1158, 0.0
    %v1279 = vmax.f32 %v1160, 0.0
    %v1280 = vmax.f32 %v1164, 0.0
    %v1281 = vmax.f32 %v1166, 0.0
    %v1282 = vmax.f32 %v1168, 0.0
    %v1283 = vmax.f32 %v1170, 0.0
    %v1284 = vmax.f32 %v1174, 0.0
    %v1285 = vmax.f32 %v1176, 0.0
    %v1286 = vmax.f32 %v1178, 0.0
    %v1287 = vmax.f32 %v1180, 0.0
    %v1288 = vmax.f32 %v1184, 0.0
    %v1289 = vmax.f32 %v1186, 0.0
    %v1290 = vmax.f32 %v1188, 0.0
    %v1291 = vmax.f32 %v1190, 0.0
    %v1292 = vmax.f32 %v1194, 0.0
    %v1293 = vmax.f32 %v1196, 0.0
    %v1294 = vmax.f32 %v1198, 0.0
    %v1295 = vmax.f32 %v1200, 0.0
    %v1296 = vmax.f32 %v1204, 0.0
    %v1297 = vmax.f32 %v1206, 0.0
    %v1298 = vmax.f32 %v1208, 0.0
    %v1299 = vmax.f32 %v1210, 0.0
    %v1300 = vmax.f32 %v1214, 0.0
    %v1301 = vmax.f32 %v1216, 0.0
    %v1302 = vmax.f32 %v1218, 0.0
    %v1303 = vmax.f32 %v1220, 0.0
    %v1304 = vmax.f32 %v1224, 0.0
    %v1305 = vmax.f32 %v1226, 0.0
    %v1306 = vmax.f32 %v1228, 0.0
    %v1307 = vmax.f32 %v1230, 0.0
    %v1308 = vmax.f32 %v1234, 0.0
    %v1309 = vmax.f32 %v1236, 0.0
    %v1310 = vmax.f32 %v1238, 0.0
    %v1311 = vmax.f32 %v1240, 0.0
    %v1312 = vmax.f32 %v1244, 0.0
    %v1313 = vmax.f32 %v1246, 0.0
    %v1314 = vmax.f32 %v1248, 0.0
    %v1315 = vmax.f32 %v1250, 0.0
    %v1316 = vpack.c.bf16 %v1254, %v1252
    %v1317 = vpack.c.bf16 %v1255, %v1253
    %v1318 = vpack.c.bf16 %v1258, %v1256
    %v1319 = vpack.c.bf16 %v1259, %v1257
    %v1320 = vpack.c.bf16 %v1262, %v1260
    %v1321 = vpack.c.bf16 %v1263, %v1261
    %v1322 = vpack.c.bf16 %v1266, %v1264
    %v1323 = vpack.c.bf16 %v1267, %v1265
    %v1324 = vpack.c.bf16 %v1270, %v1268
    %v1325 = vpack.c.bf16 %v1271, %v1269
    %v1326 = vpack.c.bf16 %v1274, %v1272
    %v1327 = vpack.c.bf16 %v1275, %v1273
    %v1328 = vpack.c.bf16 %v1278, %v1276
    %v1329 = vpack.c.bf16 %v1279, %v1277
    %v1330 = vpack.c.bf16 %v1282, %v1280
    %v1331 = vpack.c.bf16 %v1283, %v1281
    %v1332 = vpack.c.bf16 %v1286, %v1284
    %v1333 = vpack.c.bf16 %v1287, %v1285
    %v1334 = vpack.c.bf16 %v1290, %v1288
    %v1335 = vpack.c.bf16 %v1291, %v1289
    %v1336 = vpack.c.bf16 %v1294, %v1292
    %v1337 = vpack.c.bf16 %v1295, %v1293
    %v1338 = vpack.c.bf16 %v1298, %v1296
    %v1339 = vpack.c.bf16 %v1299, %v1297
    %v1340 = vpack.c.bf16 %v1302, %v1300
    %v1341 = vpack.c.bf16 %v1303, %v1301
    %v1342 = vpack.c.bf16 %v1306, %v1304
    %v1343 = vpack.c.bf16 %v1307, %v1305
    %v1344 = vpack.c.bf16 %v1310, %v1308
    %v1345 = vpack.c.bf16 %v1311, %v1309
    %v1346 = vpack.c.bf16 %v1314, %v1312
    %v1347 = vpack.c.bf16 %v1315, %v1313
    %1348 = vst [vmem:[#allocation2] sm:$0xff] %v1316
    %1349 = vst [vmem:[#allocation2 + $0x8] sm:$0xff] %v1317
    %1350 = vst [vmem:[#allocation2 + $0x10] sm:$0xff] %v1318
    %1351 = vst [vmem:[#allocation2 + $0x18] sm:$0xff] %v1319
    %1352 = vst [vmem:[#allocation2 + $0x20] sm:$0xff] %v1320
    %1353 = vst [vmem:[#allocation2 + $0x28] sm:$0xff] %v1321
    %1354 = vst [vmem:[#allocation2 + $0x30] sm:$0xff] %v1322
    %1355 = vst [vmem:[#allocation2 + $0x38] sm:$0xff] %v1323
    %1356 = vst [vmem:[#allocation2 + $0x40] sm:$0xff] %v1324
    %1357 = vst [vmem:[#allocation2 + $0x48] sm:$0xff] %v1325
    %1358 = vst [vmem:[#allocation2 + $0x50] sm:$0xff] %v1326
    %1359 = vst [vmem:[#allocation2 + $0x58] sm:$0xff] %v1327
    %1360 = vst [vmem:[#allocation2 + $0x60] sm:$0xff] %v1328
    %1361 = vst [vmem:[#allocation2 + $0x68] sm:$0xff] %v1329
    %1362 = vst [vmem:[#allocation2 + $0x70] sm:$0xff] %v1330
    %1363 = vst [vmem:[#allocation2 + $0x78] sm:$0xff] %v1331
    %1364 = vst [vmem:[#allocation2 + $0x80] sm:$0xff] %v1332
    %1365 = vst [vmem:[#allocation2 + $0x88] sm:$0xff] %v1333
    %1366 = vst [vmem:[#allocation2 + $0x90] sm:$0xff] %v1334
    %1367 = vst [vmem:[#allocation2 + $0x98] sm:$0xff] %v1335
    %1368 = vst [vmem:[#allocation2 + $0xa0] sm:$0xff] %v1336
    %1369 = vst [vmem:[#allocation2 + $0xa8] sm:$0xff] %v1337
    %1370 = vst [vmem:[#allocation2 + $0xb0] sm:$0xff] %v1338
    %1371 = vst [vmem:[#allocation2 + $0xb8] sm:$0xff] %v1339
    %1372 = vst [vmem:[#allocation2 + $0xc0] sm:$0xff] %v1340
    %1373 = vst [vmem:[#allocation2 + $0xc8] sm:$0xff] %v1341
    %1374 = vst [vmem:[#allocation2 + $0xd0] sm:$0xff] %v1342
    %1375 = vst [vmem:[#allocation2 + $0xd8] sm:$0xff] %v1343
    %1376 = vst [vmem:[#allocation2 + $0xe0] sm:$0xff] %v1344
    %1377 = vst [vmem:[#allocation2 + $0xe8] sm:$0xff] %v1345
    %1378 = vst [vmem:[#allocation2 + $0xf0] sm:$0xff] %v1346
    %1379 = vst [vmem:[#allocation2 + $0xf8] sm:$0xff] %v1347
    %v1380 = vld [vmem:[#allocation2] sm:$0xff]
    %v1381 = vld [vmem:[#allocation2 + $0x8] sm:$0xff]
    %v1382 = vld [vmem:[#allocation2 + $0x10] sm:$0xff]
    %v1383 = vld [vmem:[#allocation2 + $0x18] sm:$0xff]
    %v1384 = vld [vmem:[#allocation2 + $0x20] sm:$0xff]
    %v1385 = vld [vmem:[#allocation2 + $0x28] sm:$0xff]
    %v1386 = vld [vmem:[#allocation2 + $0x30] sm:$0xff]
    %v1387 = vld [vmem:[#allocation2 + $0x38] sm:$0xff]
    %v1388 = vld [vmem:[#allocation2 + $0x40] sm:$0xff]
    %v1389 = vld [vmem:[#allocation2 + $0x48] sm:$0xff]
    %v1390 = vld [vmem:[#allocation2 + $0x50] sm:$0xff]
    %v1391 = vld [vmem:[#allocation2 + $0x58] sm:$0xff]
    %v1392 = vld [vmem:[#allocation2 + $0x60] sm:$0xff]
    %v1393 = vld [vmem:[#allocation2 + $0x68] sm:$0xff]
    %v1394 = vld [vmem:[#allocation2 + $0x70] sm:$0xff]
    %v1395 = vld [vmem:[#allocation2 + $0x78] sm:$0xff]
    %v1396 = vld [vmem:[#allocation2 + $0x80] sm:$0xff]
    %v1397 = vld [vmem:[#allocation2 + $0x88] sm:$0xff]
    %v1398 = vld [vmem:[#allocation2 + $0x90] sm:$0xff]
    %v1399 = vld [vmem:[#allocation2 + $0x98] sm:$0xff]
    %v1400 = vld [vmem:[#allocation2 + $0xa0] sm:$0xff]
    %v1401 = vld [vmem:[#allocation2 + $0xa8] sm:$0xff]
    %v1402 = vld [vmem:[#allocation2 + $0xb0] sm:$0xff]
    %v1403 = vld [vmem:[#allocation2 + $0xb8] sm:$0xff]
    %v1404 = vld [vmem:[#allocation2 + $0xc0] sm:$0xff]
    %v1405 = vld [vmem:[#allocation2 + $0xc8] sm:$0xff]
    %v1406 = vld [vmem:[#allocation2 + $0xd0] sm:$0xff]
    %v1407 = vld [vmem:[#allocation2 + $0xd8] sm:$0xff]
    %v1408 = vld [vmem:[#allocation2 + $0xe0] sm:$0xff]
    %v1409 = vld [vmem:[#allocation2 + $0xe8] sm:$0xff]
    %v1410 = vld [vmem:[#allocation2 + $0xf0] sm:$0xff]
    %v1411 = vld [vmem:[#allocation2 + $0xf8] sm:$0xff]
    %v1412 = vld [vmem:[#allocation8] sm:$0xff]
    %v1413 = vld [vmem:[#allocation8 + $0x8] sm:$0xff]
    %v1414 = vld [vmem:[#allocation8 + $0x10] sm:$0xff]
    %v1415 = vld [vmem:[#allocation8 + $0x18] sm:$0xff]
    %v1416 = vld [vmem:[#allocation8 + $0x20] sm:$0xff]
    %v1417 = vld [vmem:[#allocation8 + $0x28] sm:$0xff]
    %v1418 = vld [vmem:[#allocation8 + $0x30] sm:$0xff]
    %v1419 = vld [vmem:[#allocation8 + $0x38] sm:$0xff]
    %v1420 = vld [vmem:[#allocation8 + $0x40] sm:$0xff]
    %v1421 = vld [vmem:[#allocation8 + $0x48] sm:$0xff]
    %v1422 = vld [vmem:[#allocation8 + $0x50] sm:$0xff]
    %v1423 = vld [vmem:[#allocation8 + $0x58] sm:$0xff]
    %v1424 = vld [vmem:[#allocation8 + $0x60] sm:$0xff]
    %v1425 = vld [vmem:[#allocation8 + $0x68] sm:$0xff]
    %v1426 = vld [vmem:[#allocation8 + $0x70] sm:$0xff]
    %v1427 = vld [vmem:[#allocation8 + $0x78] sm:$0xff]
    %v1428 = vld [vmem:[#allocation8 + $0x80] sm:$0xff]
    %v1429 = vld [vmem:[#allocation8 + $0x88] sm:$0xff]
    %v1430 = vld [vmem:[#allocation8 + $0x90] sm:$0xff]
    %v1431 = vld [vmem:[#allocation8 + $0x98] sm:$0xff]
    %v1432 = vld [vmem:[#allocation8 + $0xa0] sm:$0xff]
    %v1433 = vld [vmem:[#allocation8 + $0xa8] sm:$0xff]
    %v1434 = vld [vmem:[#allocation8 + $0xb0] sm:$0xff]
    %v1435 = vld [vmem:[#allocation8 + $0xb8] sm:$0xff]
    %v1436 = vld [vmem:[#allocation8 + $0xc0] sm:$0xff]
    %v1437 = vld [vmem:[#allocation8 + $0xc8] sm:$0xff]
    %v1438 = vld [vmem:[#allocation8 + $0xd0] sm:$0xff]
    %v1439 = vld [vmem:[#allocation8 + $0xd8] sm:$0xff]
    %v1440 = vld [vmem:[#allocation8 + $0xe0] sm:$0xff]
    %v1441 = vld [vmem:[#allocation8 + $0xe8] sm:$0xff]
    %v1442 = vld [vmem:[#allocation8 + $0xf0] sm:$0xff]
    %v1443 = vld [vmem:[#allocation8 + $0xf8] sm:$0xff]
    %v1444 = vld [vmem:[%s4] sm:$0x3]
    %v1446 = vlaneseq
    %v1447 = vshrl.u32 %v1446, 7
    %v1448 = vsub.s32 0, %v1447
    %v1449 = vrot.slane %v1444, %v1448
    %v1450 = vlaneseq
    %v1451 = vshrl.u32 %v1450, 7
    %v1452 = vsub.s32 1, %v1451
    %v1453 = vrot.slane %v1444, %v1452
    %v1488 = vunpack.c.l.b16 %v1412
    %v1489 = vunpack.c.h.b16 %v1412
    %v1490 = vunpack.c.l.b16 %v1413
    %v1491 = vunpack.c.h.b16 %v1413
    %v1492 = vunpack.c.l.b16 %v1414
    %v1493 = vunpack.c.h.b16 %v1414
    %v1494 = vunpack.c.l.b16 %v1415
    %v1495 = vunpack.c.h.b16 %v1415
    %v1496 = vunpack.c.l.b16 %v1416
    %v1497 = vunpack.c.h.b16 %v1416
    %v1498 = vunpack.c.l.b16 %v1417
    %v1499 = vunpack.c.h.b16 %v1417
    %v1500 = vunpack.c.l.b16 %v1418
    %v1501 = vunpack.c.h.b16 %v1418
    %v1502 = vunpack.c.l.b16 %v1419
    %v1503 = vunpack.c.h.b16 %v1419
    %v1504 = vunpack.c.l.b16 %v1420
    %v1505 = vunpack.c.h.b16 %v1420
    %v1506 = vunpack.c.l.b16 %v1421
    %v1507 = vunpack.c.h.b16 %v1421
    %v1508 = vunpack.c.l.b16 %v1422
    %v1509 = vunpack.c.h.b16 %v1422
    %v1510 = vunpack.c.l.b16 %v1423
    %v1511 = vunpack.c.h.b16 %v1423
    %v1512 = vunpack.c.l.b16 %v1424
    %v1513 = vunpack.c.h.b16 %v1424
    %v1514 = vunpack.c.l.b16 %v1425
    %v1515 = vunpack.c.h.b16 %v1425
    %v1516 = vunpack.c.l.b16 %v1426
    %v1517 = vunpack.c.h.b16 %v1426
    %v1518 = vunpack.c.l.b16 %v1427
    %v1519 = vunpack.c.h.b16 %v1427
    %v1520 = vunpack.c.l.b16 %v1428
    %v1521 = vunpack.c.h.b16 %v1428
    %v1522 = vunpack.c.l.b16 %v1429
    %v1523 = vunpack.c.h.b16 %v1429
    %v1524 = vunpack.c.l.b16 %v1430
    %v1525 = vunpack.c.h.b16 %v1430
    %v1526 = vunpack.c.l.b16 %v1431
    %v1527 = vunpack.c.h.b16 %v1431
    %v1528 = vunpack.c.l.b16 %v1432
    %v1529 = vunpack.c.h.b16 %v1432
    %v1530 = vunpack.c.l.b16 %v1433
    %v1531 = vunpack.c.h.b16 %v1433
    %v1532 = vunpack.c.l.b16 %v1434
    %v1533 = vunpack.c.h.b16 %v1434
    %v1534 = vunpack.c.l.b16 %v1435
    %v1535 = vunpack.c.h.b16 %v1435
    %v1536 = vunpack.c.l.b16 %v1436
    %v1537 = vunpack.c.h.b16 %v1436
    %v1538 = vunpack.c.l.b16 %v1437
    %v1539 = vunpack.c.h.b16 %v1437
    %v1540 = vunpack.c.l.b16 %v1438
    %v1541 = vunpack.c.h.b16 %v1438
    %v1542 = vunpack.c.l.b16 %v1439
    %v1543 = vunpack.c.h.b16 %v1439
    %v1544 = vunpack.c.l.b16 %v1440
    %v1545 = vunpack.c.h.b16 %v1440
    %v1546 = vunpack.c.l.b16 %v1441
    %v1547 = vunpack.c.h.b16 %v1441
    %v1548 = vunpack.c.l.b16 %v1442
    %v1549 = vunpack.c.h.b16 %v1442
    %v1550 = vunpack.c.l.b16 %v1443
    %v1551 = vunpack.c.h.b16 %v1443
    %v1552 = vpack.c.b16 %v1490, %v1488
    %v1553 = vpack.c.b16 %v1491, %v1489
    %v1554 = vpack.c.b16 %v1494, %v1492
    %v1555 = vpack.c.b16 %v1495, %v1493
    %v1556 = vpack.c.b16 %v1498, %v1496
    %v1557 = vpack.c.b16 %v1499, %v1497
    %v1558 = vpack.c.b16 %v1502, %v1500
    %v1559 = vpack.c.b16 %v1503, %v1501
    %v1560 = vpack.c.b16 %v1506, %v1504
    %v1561 = vpack.c.b16 %v1507, %v1505
    %v1562 = vpack.c.b16 %v1510, %v1508
    %v1563 = vpack.c.b16 %v1511, %v1509
    %v1564 = vpack.c.b16 %v1514, %v1512
    %v1565 = vpack.c.b16 %v1515, %v1513
    %v1566 = vpack.c.b16 %v1518, %v1516
    %v1567 = vpack.c.b16 %v1519, %v1517
    %v1568 = vpack.c.b16 %v1522, %v1520
    %v1569 = vpack.c.b16 %v1523, %v1521
    %v1570 = vpack.c.b16 %v1526, %v1524
    %v1571 = vpack.c.b16 %v1527, %v1525
    %v1572 = vpack.c.b16 %v1530, %v1528
    %v1573 = vpack.c.b16 %v1531, %v1529
    %v1574 = vpack.c.b16 %v1534, %v1532
    %v1575 = vpack.c.b16 %v1535, %v1533
    %v1576 = vpack.c.b16 %v1538, %v1536
    %v1577 = vpack.c.b16 %v1539, %v1537
    %v1578 = vpack.c.b16 %v1542, %v1540
    %v1579 = vpack.c.b16 %v1543, %v1541
    %v1580 = vpack.c.b16 %v1546, %v1544
    %v1581 = vpack.c.b16 %v1547, %v1545
    %v1582 = vpack.c.b16 %v1550, %v1548
    %v1583 = vpack.c.b16 %v1551, %v1549
    %1616 = vmatprep.subr.bf16.mxu0 %v1553
    %1617 = vmatpush1.bf16.msra.mxu0 %v1552
    %1618 = vmatprep.subr.bf16.mxu0 %v1555
    %1619 = vmatpush1.bf16.msra.mxu0 %v1554
    %1620 = vmatprep.subr.bf16.mxu0 %v1557
    %1621 = vmatpush1.bf16.msra.mxu0 %v1556
    %1622 = vmatprep.subr.bf16.mxu0 %v1559
    %1623 = vmatpush1.bf16.msra.mxu0 %v1558
    %1624 = vmatprep.subr.bf16.mxu0 %v1561
    %1625 = vmatpush1.bf16.msra.mxu0 %v1560
    %1626 = vmatprep.subr.bf16.mxu0 %v1563
    %1627 = vmatpush1.bf16.msra.mxu0 %v1562
    %1628 = vmatprep.subr.bf16.mxu0 %v1565
    %1629 = vmatpush1.bf16.msra.mxu0 %v1564
    %1630 = vmatprep.subr.bf16.mxu0 %v1567
    %1631 = vmatpush1.bf16.msra.mxu0 %v1566
    %1632 = vmatprep.subr.bf16.mxu0 %v1569
    %1633 = vmatpush1.bf16.msra.mxu0 %v1568
    %1634 = vmatprep.subr.bf16.mxu0 %v1571
    %1635 = vmatpush1.bf16.msra.mxu0 %v1570
    %1636 = vmatprep.subr.bf16.mxu0 %v1573
    %1637 = vmatpush1.bf16.msra.mxu0 %v1572
    %1638 = vmatprep.subr.bf16.mxu0 %v1575
    %1639 = vmatpush1.bf16.msra.mxu0 %v1574
    %1640 = vmatprep.subr.bf16.mxu0 %v1577
    %1641 = vmatpush1.bf16.msra.mxu0 %v1576
    %1642 = vmatprep.subr.bf16.mxu0 %v1579
    %1643 = vmatpush1.bf16.msra.mxu0 %v1578
    %1644 = vmatprep.subr.bf16.mxu0 %v1581
    %1645 = vmatpush1.bf16.msra.mxu0 %v1580
    %1646 = vmatprep.subr.bf16.mxu0 %v1583
    %1647 = vmatpush1.bf16.msra.mxu0 %v1582
    %1648 = vmatprep.mubr.bf16.mxu0 %v1381
    %1649 = vmatmul.mubr.bf16.gmra.mrb[0].mxu0 %v1380
    %v1650 = vpop.f32.mrb[0].mxu0
    %v1651 = vadd.f32 %v1449, %v1650
    %v1652 = vpop.f32.mrb[0].mxu0
    %v1653 = vadd.f32 %v1453, %v1652
    %v1654 = vpop.f32.mrb[0].mxu0
    %v1655 = vadd.f32 %v1449, %v1654
    %v1656 = vpop.f32.mrb[0].mxu0
    %v1657 = vadd.f32 %v1453, %v1656
    %1658 = vmatprep.mubr.bf16.mxu0 %v1383
    %1659 = vmatmul.mubr.bf16.gmra.mrb[0].mxu0 %v1382
    %v1660 = vpop.f32.mrb[0].mxu0
    %v1661 = vadd.f32 %v1449, %v1660
    %v1662 = vpop.f32.mrb[0].mxu0
    %v1663 = vadd.f32 %v1453, %v1662
    %v1664 = vpop.f32.mrb[0].mxu0
    %v1665 = vadd.f32 %v1449, %v1664
    %v1666 = vpop.f32.mrb[0].mxu0
    %v1667 = vadd.f32 %v1453, %v1666
    %1668 = vmatprep.mubr.bf16.mxu0 %v1385
    %1669 = vmatmul.mubr.bf16.gmra.mrb[0].mxu0 %v1384
    %v1670 = vpop.f32.mrb[0].mxu0
    %v1671 = vadd.f32 %v1449, %v1670
    %v1672 = vpop.f32.mrb[0].mxu0
    %v1673 = vadd.f32 %v1453, %v1672
    %v1674 = vpop.f32.mrb[0].mxu0
    %v1675 = vadd.f32 %v1449, %v1674
    %v1676 = vpop.f32.mrb[0].mxu0
    %v1677 = vadd.f32 %v1453, %v1676
    %1678 = vmatprep.mubr.bf16.mxu0 %v1387
    %1679 = vmatmul.mubr.bf16.gmra.mrb[0].mxu0 %v1386
    %v1680 = vpop.f32.mrb[0].mxu0
    %v1681 = vadd.f32 %v1449, %v1680
    %v1682 = vpop.f32.mrb[0].mxu0
    %v1683 = vadd.f32 %v1453, %v1682
    %v1684 = vpop.f32.mrb[0].mxu0
    %v1685 = vadd.f32 %v1449, %v1684
    %v1686 = vpop.f32.mrb[0].mxu0
    %v1687 = vadd.f32 %v1453, %v1686
    %1688 = vmatprep.mubr.bf16.mxu0 %v1389
    %1689 = vmatmul.mubr.bf16.gmra.mrb[0].mxu0 %v1388
    %v1690 = vpop.f32.mrb[0].mxu0
    %v1691 = vadd.f32 %v1449, %v1690
    %v1692 = vpop.f32.mrb[0].mxu0
    %v1693 = vadd.f32 %v1453, %v1692
    %v1694 = vpop.f32.mrb[0].mxu0
    %v1695 = vadd.f32 %v1449, %v1694
    %v1696 = vpop.f32.mrb[0].mxu0
    %v1697 = vadd.f32 %v1453, %v1696
    %1698 = vmatprep.mubr.bf16.mxu0 %v1391
    %1699 = vmatmul.mubr.bf16.gmra.mrb[0].mxu0 %v1390
    %v1700 = vpop.f32.mrb[0].mxu0
    %v1701 = vadd.f32 %v1449, %v1700
    %v1702 = vpop.f32.mrb[0].mxu0
    %v1703 = vadd.f32 %v1453, %v1702
    %v1704 = vpop.f32.mrb[0].mxu0
    %v1705 = vadd.f32 %v1449, %v1704
    %v1706 = vpop.f32.mrb[0].mxu0
    %v1707 = vadd.f32 %v1453, %v1706
    %1708 = vmatprep.mubr.bf16.mxu0 %v1393
    %1709 = vmatmul.mubr.bf16.gmra.mrb[0].mxu0 %v1392
    %v1710 = vpop.f32.mrb[0].mxu0
    %v1711 = vadd.f32 %v1449, %v1710
    %v1712 = vpop.f32.mrb[0].mxu0
    %v1713 = vadd.f32 %v1453, %v1712
    %v1714 = vpop.f32.mrb[0].mxu0
    %v1715 = vadd.f32 %v1449, %v1714
    %v1716 = vpop.f32.mrb[0].mxu0
    %v1717 = vadd.f32 %v1453, %v1716
    %1718 = vmatprep.mubr.bf16.mxu0 %v1395
    %1719 = vmatmul.mubr.bf16.gmra.mrb[0].mxu0 %v1394
    %v1720 = vpop.f32.mrb[0].mxu0
    %v1721 = vadd.f32 %v1449, %v1720
    %v1722 = vpop.f32.mrb[0].mxu0
    %v1723 = vadd.f32 %v1453, %v1722
    %v1724 = vpop.f32.mrb[0].mxu0
    %v1725 = vadd.f32 %v1449, %v1724
    %v1726 = vpop.f32.mrb[0].mxu0
    %v1727 = vadd.f32 %v1453, %v1726
    %1728 = vmatprep.mubr.bf16.mxu0 %v1397
    %1729 = vmatmul.mubr.bf16.gmra.mrb[0].mxu0 %v1396
    %v1730 = vpop.f32.mrb[0].mxu0
    %v1731 = vadd.f32 %v1449, %v1730
    %v1732 = vpop.f32.mrb[0].mxu0
    %v1733 = vadd.f32 %v1453, %v1732
    %v1734 = vpop.f32.mrb[0].mxu0
    %v1735 = vadd.f32 %v1449, %v1734
    %v1736 = vpop.f32.mrb[0].mxu0
    %v1737 = vadd.f32 %v1453, %v1736
    %1738 = vmatprep.mubr.bf16.mxu0 %v1399
    %1739 = vmatmul.mubr.bf16.gmra.mrb[0].mxu0 %v1398
    %v1740 = vpop.f32.mrb[0].mxu0
    %v1741 = vadd.f32 %v1449, %v1740
    %v1742 = vpop.f32.mrb[0].mxu0
    %v1743 = vadd.f32 %v1453, %v1742
    %v1744 = vpop.f32.mrb[0].mxu0
    %v1745 = vadd.f32 %v1449, %v1744
    %v1746 = vpop.f32.mrb[0].mxu0
    %v1747 = vadd.f32 %v1453, %v1746
    %1748 = vmatprep.mubr.bf16.mxu0 %v1401
    %1749 = vmatmul.mubr.bf16.gmra.mrb[0].mxu0 %v1400
    %v1750 = vpop.f32.mrb[0].mxu0
    %v1751 = vadd.f32 %v1449, %v1750
    %v1752 = vpop.f32.mrb[0].mxu0
    %v1753 = vadd.f32 %v1453, %v1752
    %v1754 = vpop.f32.mrb[0].mxu0
    %v1755 = vadd.f32 %v1449, %v1754
    %v1756 = vpop.f32.mrb[0].mxu0
    %v1757 = vadd.f32 %v1453, %v1756
    %1758 = vmatprep.mubr.bf16.mxu0 %v1403
    %1759 = vmatmul.mubr.bf16.gmra.mrb[0].mxu0 %v1402
    %v1760 = vpop.f32.mrb[0].mxu0
    %v1761 = vadd.f32 %v1449, %v1760
    %v1762 = vpop.f32.mrb[0].mxu0
    %v1763 = vadd.f32 %v1453, %v1762
    %v1764 = vpop.f32.mrb[0].mxu0
    %v1765 = vadd.f32 %v1449, %v1764
    %v1766 = vpop.f32.mrb[0].mxu0
    %v1767 = vadd.f32 %v1453, %v1766
    %1768 = vmatprep.mubr.bf16.mxu0 %v1405
    %1769 = vmatmul.mubr.bf16.gmra.mrb[0].mxu0 %v1404
    %v1770 = vpop.f32.mrb[0].mxu0
    %v1771 = vadd.f32 %v1449, %v1770
    %v1772 = vpop.f32.mrb[0].mxu0
    %v1773 = vadd.f32 %v1453, %v1772
    %v1774 = vpop.f32.mrb[0].mxu0
    %v1775 = vadd.f32 %v1449, %v1774
    %v1776 = vpop.f32.mrb[0].mxu0
    %v1777 = vadd.f32 %v1453, %v1776
    %1778 = vmatprep.mubr.bf16.mxu0 %v1407
    %1779 = vmatmul.mubr.bf16.gmra.mrb[0].mxu0 %v1406
    %v1780 = vpop.f32.mrb[0].mxu0
    %v1781 = vadd.f32 %v1449, %v1780
    %v1782 = vpop.f32.mrb[0].mxu0
    %v1783 = vadd.f32 %v1453, %v1782
    %v1784 = vpop.f32.mrb[0].mxu0
    %v1785 = vadd.f32 %v1449, %v1784
    %v1786 = vpop.f32.mrb[0].mxu0
    %v1787 = vadd.f32 %v1453, %v1786
    %1788 = vmatprep.mubr.bf16.mxu0 %v1409
    %1789 = vmatmul.mubr.bf16.gmra.mrb[0].mxu0 %v1408
    %v1790 = vpop.f32.mrb[0].mxu0
    %v1791 = vadd.f32 %v1449, %v1790
    %v1792 = vpop.f32.mrb[0].mxu0
    %v1793 = vadd.f32 %v1453, %v1792
    %v1794 = vpop.f32.mrb[0].mxu0
    %v1795 = vadd.f32 %v1449, %v1794
    %v1796 = vpop.f32.mrb[0].mxu0
    %v1797 = vadd.f32 %v1453, %v1796
    %1798 = vmatprep.mubr.bf16.mxu0 %v1411
    %1799 = vmatmul.mubr.bf16.gmra.mrb[0].mxu0 %v1410
    %v1800 = vpop.f32.mrb[0].mxu0
    %v1801 = vadd.f32 %v1449, %v1800
    %v1802 = vpop.f32.mrb[0].mxu0
    %v1803 = vadd.f32 %v1453, %v1802
    %v1804 = vpop.f32.mrb[0].mxu0
    %v1805 = vadd.f32 %v1449, %v1804
    %v1806 = vpop.f32.mrb[0].mxu0
    %v1807 = vadd.f32 %v1453, %v1806
    %1808 = vdwg.mxu0
    %v1809 = vmax.f32 %v1651, 0.0
    %v1810 = vmax.f32 %v1653, 0.0
    %v1811 = vmax.f32 %v1655, 0.0
    %v1812 = vmax.f32 %v1657, 0.0
    %v1813 = vmax.f32 %v1661, 0.0
    %v1814 = vmax.f32 %v1663, 0.0
    %v1815 = vmax.f32 %v1665, 0.0
    %v1816 = vmax.f32 %v1667, 0.0
    %v1817 = vmax.f32 %v1671, 0.0
    %v1818 = vmax.f32 %v1673, 0.0
    %v1819 = vmax.f32 %v1675, 0.0
    %v1820 = vmax.f32 %v1677, 0.0
    %v1821 = vmax.f32 %v1681, 0.0
    %v1822 = vmax.f32 %v1683, 0.0
    %v1823 = vmax.f32 %v1685, 0.0
    %v1824 = vmax.f32 %v1687, 0.0
    %v1825 = vmax.f32 %v1691, 0.0
    %v1826 = vmax.f32 %v1693, 0.0
    %v1827 = vmax.f32 %v1695, 0.0
    %v1828 = vmax.f32 %v1697, 0.0
    %v1829 = vmax.f32 %v1701, 0.0
    %v1830 = vmax.f32 %v1703, 0.0
    %v1831 = vmax.f32 %v1705, 0.0
    %v1832 = vmax.f32 %v1707, 0.0
    %v1833 = vmax.f32 %v1711, 0.0
    %v1834 = vmax.f32 %v1713, 0.0
    %v1835 = vmax.f32 %v1715, 0.0
    %v1836 = vmax.f32 %v1717, 0.0
    %v1837 = vmax.f32 %v1721, 0.0
    %v1838 = vmax.f32 %v1723, 0.0
    %v1839 = vmax.f32 %v1725, 0.0
    %v1840 = vmax.f32 %v1727, 0.0
    %v1841 = vmax.f32 %v1731, 0.0
    %v1842 = vmax.f32 %v1733, 0.0
    %v1843 = vmax.f32 %v1735, 0.0
    %v1844 = vmax.f32 %v1737, 0.0
    %v1845 = vmax.f32 %v1741, 0.0
    %v1846 = vmax.f32 %v1743, 0.0
    %v1847 = vmax.f32 %v1745, 0.0
    %v1848 = vmax.f32 %v1747, 0.0
    %v1849 = vmax.f32 %v1751, 0.0
    %v1850 = vmax.f32 %v1753, 0.0
    %v1851 = vmax.f32 %v1755, 0.0
    %v1852 = vmax.f32 %v1757, 0.0
    %v1853 = vmax.f32 %v1761, 0.0
    %v1854 = vmax.f32 %v1763, 0.0
    %v1855 = vmax.f32 %v1765, 0.0
    %v1856 = vmax.f32 %v1767, 0.0
    %v1857 = vmax.f32 %v1771, 0.0
    %v1858 = vmax.f32 %v1773, 0.0
    %v1859 = vmax.f32 %v1775, 0.0
    %v1860 = vmax.f32 %v1777, 0.0
    %v1861 = vmax.f32 %v1781, 0.0
    %v1862 = vmax.f32 %v1783, 0.0
    %v1863 = vmax.f32 %v1785, 0.0
    %v1864 = vmax.f32 %v1787, 0.0
    %v1865 = vmax.f32 %v1791, 0.0
    %v1866 = vmax.f32 %v1793, 0.0
    %v1867 = vmax.f32 %v1795, 0.0
    %v1868 = vmax.f32 %v1797, 0.0
    %v1869 = vmax.f32 %v1801, 0.0
    %v1870 = vmax.f32 %v1803, 0.0
    %v1871 = vmax.f32 %v1805, 0.0
    %v1872 = vmax.f32 %v1807, 0.0
    %v1873 = vld [vmem:[%s5] sm:$0x3]
    %v1875 = vlaneseq
    %v1876 = vshrl.u32 %v1875, 7
    %v1877 = vsub.s32 0, %v1876
    %v1878 = vrot.slane %v1873, %v1877
    %v1879 = vlaneseq
    %v1880 = vshrl.u32 %v1879, 7
    %v1881 = vsub.s32 1, %v1880
    %v1882 = vrot.slane %v1873, %v1881
    %v1885 = vadd.f32 %v1878, %v1809
    %v1886 = vadd.f32 %v1882, %v1810
    %v1887 = vadd.f32 %v1878, %v1811
    %v1888 = vadd.f32 %v1882, %v1812
    %v1889 = vadd.f32 %v1878, %v1813
    %v1890 = vadd.f32 %v1882, %v1814
    %v1891 = vadd.f32 %v1878, %v1815
    %v1892 = vadd.f32 %v1882, %v1816
    %v1893 = vadd.f32 %v1878, %v1817
    %v1894 = vadd.f32 %v1882, %v1818
    %v1895 = vadd.f32 %v1878, %v1819
    %v1896 = vadd.f32 %v1882, %v1820
    %v1897 = vadd.f32 %v1878, %v1821
    %v1898 = vadd.f32 %v1882, %v1822
    %v1899 = vadd.f32 %v1878, %v1823
    %v1900 = vadd.f32 %v1882, %v1824
    %v1901 = vadd.f32 %v1878, %v1825
    %v1902 = vadd.f32 %v1882, %v1826
    %v1903 = vadd.f32 %v1878, %v1827
    %v1904 = vadd.f32 %v1882, %v1828
    %v1905 = vadd.f32 %v1878, %v1829
    %v1906 = vadd.f32 %v1882, %v1830
    %v1907 = vadd.f32 %v1878, %v1831
    %v1908 = vadd.f32 %v1882, %v1832
    %v1909 = vadd.f32 %v1878, %v1833
    %v1910 = vadd.f32 %v1882, %v1834
    %v1911 = vadd.f32 %v1878, %v1835
    %v1912 = vadd.f32 %v1882, %v1836
    %v1913 = vadd.f32 %v1878, %v1837
    %v1914 = vadd.f32 %v1882, %v1838
    %v1915 = vadd.f32 %v1878, %v1839
    %v1916 = vadd.f32 %v1882, %v1840
    %v1917 = vadd.f32 %v1878, %v1841
    %v1918 = vadd.f32 %v1882, %v1842
    %v1919 = vadd.f32 %v1878, %v1843
    %v1920 = vadd.f32 %v1882, %v1844
    %v1921 = vadd.f32 %v1878, %v1845
    %v1922 = vadd.f32 %v1882, %v1846
    %v1923 = vadd.f32 %v1878, %v1847
    %v1924 = vadd.f32 %v1882, %v1848
    %v1925 = vadd.f32 %v1878, %v1849
    %v1926 = vadd.f32 %v1882, %v1850
    %v1927 = vadd.f32 %v1878, %v1851
    %v1928 = vadd.f32 %v1882, %v1852
    %v1929 = vadd.f32 %v1878, %v1853
    %v1930 = vadd.f32 %v1882, %v1854
    %v1931 = vadd.f32 %v1878, %v1855
    %v1932 = vadd.f32 %v1882, %v1856
    %v1933 = vadd.f32 %v1878, %v1857
    %v1934 = vadd.f32 %v1882, %v1858
    %v1935 = vadd.f32 %v1878, %v1859
    %v1936 = vadd.f32 %v1882, %v1860
    %v1937 = vadd.f32 %v1878, %v1861
    %v1938 = vadd.f32 %v1882, %v1862
    %v1939 = vadd.f32 %v1878, %v1863
    %v1940 = vadd.f32 %v1882, %v1864
    %v1941 = vadd.f32 %v1878, %v1865
    %v1942 = vadd.f32 %v1882, %v1866
    %v1943 = vadd.f32 %v1878, %v1867
    %v1944 = vadd.f32 %v1882, %v1868
    %v1945 = vadd.f32 %v1878, %v1869
    %v1946 = vadd.f32 %v1882, %v1870
    %v1947 = vadd.f32 %v1878, %v1871
    %v1948 = vadd.f32 %v1882, %v1872
    %v1949 = vpack.c.bf16 %v1887, %v1885
    %v1950 = vpack.c.bf16 %v1888, %v1886
    %v1951 = vpack.c.bf16 %v1891, %v1889
    %v1952 = vpack.c.bf16 %v1892, %v1890
    %v1953 = vpack.c.bf16 %v1895, %v1893
    %v1954 = vpack.c.bf16 %v1896, %v1894
    %v1955 = vpack.c.bf16 %v1899, %v1897
    %v1956 = vpack.c.bf16 %v1900, %v1898
    %v1957 = vpack.c.bf16 %v1903, %v1901
    %v1958 = vpack.c.bf16 %v1904, %v1902
    %v1959 = vpack.c.bf16 %v1907, %v1905
    %v1960 = vpack.c.bf16 %v1908, %v1906
    %v1961 = vpack.c.bf16 %v1911, %v1909
    %v1962 = vpack.c.bf16 %v1912, %v1910
    %v1963 = vpack.c.bf16 %v1915, %v1913
    %v1964 = vpack.c.bf16 %v1916, %v1914
    %v1965 = vpack.c.bf16 %v1919, %v1917
    %v1966 = vpack.c.bf16 %v1920, %v1918
    %v1967 = vpack.c.bf16 %v1923, %v1921
    %v1968 = vpack.c.bf16 %v1924, %v1922
    %v1969 = vpack.c.bf16 %v1927, %v1925
    %v1970 = vpack.c.bf16 %v1928, %v1926
    %v1971 = vpack.c.bf16 %v1931, %v1929
    %v1972 = vpack.c.bf16 %v1932, %v1930
    %v1973 = vpack.c.bf16 %v1935, %v1933
    %v1974 = vpack.c.bf16 %v1936, %v1934
    %v1975 = vpack.c.bf16 %v1939, %v1937
    %v1976 = vpack.c.bf16 %v1940, %v1938
    %v1977 = vpack.c.bf16 %v1943, %v1941
    %v1978 = vpack.c.bf16 %v1944, %v1942
    %v1979 = vpack.c.bf16 %v1947, %v1945
    %v1980 = vpack.c.bf16 %v1948, %v1946
    %1981 = vst [vmem:[#allocation2] sm:$0xff] %v1949
    %1982 = vst [vmem:[#allocation2 + $0x8] sm:$0xff] %v1950
    %1983 = vst [vmem:[#allocation2 + $0x10] sm:$0xff] %v1951
    %1984 = vst [vmem:[#allocation2 + $0x18] sm:$0xff] %v1952
    %1985 = vst [vmem:[#allocation2 + $0x20] sm:$0xff] %v1953
    %1986 = vst [vmem:[#allocation2 + $0x28] sm:$0xff] %v1954
    %1987 = vst [vmem:[#allocation2 + $0x30] sm:$0xff] %v1955
    %1988 = vst [vmem:[#allocation2 + $0x38] sm:$0xff] %v1956
    %1989 = vst [vmem:[#allocation2 + $0x40] sm:$0xff] %v1957
    %1990 = vst [vmem:[#allocation2 + $0x48] sm:$0xff] %v1958
    %1991 = vst [vmem:[#allocation2 + $0x50] sm:$0xff] %v1959
    %1992 = vst [vmem:[#allocation2 + $0x58] sm:$0xff] %v1960
    %1993 = vst [vmem:[#allocation2 + $0x60] sm:$0xff] %v1961
    %1994 = vst [vmem:[#allocation2 + $0x68] sm:$0xff] %v1962
    %1995 = vst [vmem:[#allocation2 + $0x70] sm:$0xff] %v1963
    %1996 = vst [vmem:[#allocation2 + $0x78] sm:$0xff] %v1964
    %1997 = vst [vmem:[#allocation2 + $0x80] sm:$0xff] %v1965
    %1998 = vst [vmem:[#allocation2 + $0x88] sm:$0xff] %v1966
    %1999 = vst [vmem:[#allocation2 + $0x90] sm:$0xff] %v1967
    %2000 = vst [vmem:[#allocation2 + $0x98] sm:$0xff] %v1968
    %2001 = vst [vmem:[#allocation2 + $0xa0] sm:$0xff] %v1969
    %2002 = vst [vmem:[#allocation2 + $0xa8] sm:$0xff] %v1970
    %2003 = vst [vmem:[#allocation2 + $0xb0] sm:$0xff] %v1971
    %2004 = vst [vmem:[#allocation2 + $0xb8] sm:$0xff] %v1972
    %2005 = vst [vmem:[#allocation2 + $0xc0] sm:$0xff] %v1973
    %2006 = vst [vmem:[#allocation2 + $0xc8] sm:$0xff] %v1974
    %2007 = vst [vmem:[#allocation2 + $0xd0] sm:$0xff] %v1975
    %2008 = vst [vmem:[#allocation2 + $0xd8] sm:$0xff] %v1976
    %2009 = vst [vmem:[#allocation2 + $0xe0] sm:$0xff] %v1977
    %2010 = vst [vmem:[#allocation2 + $0xe8] sm:$0xff] %v1978
    %2011 = vst [vmem:[#allocation2 + $0xf0] sm:$0xff] %v1979
    %2012 = vst [vmem:[#allocation2 + $0xf8] sm:$0xff] %v1980
    %v2013 = vld [vmem:[#allocation2] sm:$0xff]
    %v2014 = vld [vmem:[#allocation2 + $0x8] sm:$0xff]
    %v2015 = vld [vmem:[#allocation2 + $0x10] sm:$0xff]
    %v2016 = vld [vmem:[#allocation2 + $0x18] sm:$0xff]
    %v2017 = vld [vmem:[#allocation2 + $0x20] sm:$0xff]
    %v2018 = vld [vmem:[#allocation2 + $0x28] sm:$0xff]
    %v2019 = vld [vmem:[#allocation2 + $0x30] sm:$0xff]
    %v2020 = vld [vmem:[#allocation2 + $0x38] sm:$0xff]
    %v2021 = vld [vmem:[#allocation2 + $0x40] sm:$0xff]
    %v2022 = vld [vmem:[#allocation2 + $0x48] sm:$0xff]
    %v2023 = vld [vmem:[#allocation2 + $0x50] sm:$0xff]
    %v2024 = vld [vmem:[#allocation2 + $0x58] sm:$0xff]
    %v2025 = vld [vmem:[#allocation2 + $0x60] sm:$0xff]
    %v2026 = vld [vmem:[#allocation2 + $0x68] sm:$0xff]
    %v2027 = vld [vmem:[#allocation2 + $0x70] sm:$0xff]
    %v2028 = vld [vmem:[#allocation2 + $0x78] sm:$0xff]
    %v2029 = vld [vmem:[#allocation2 + $0x80] sm:$0xff]
    %v2030 = vld [vmem:[#allocation2 + $0x88] sm:$0xff]
    %v2031 = vld [vmem:[#allocation2 + $0x90] sm:$0xff]
    %v2032 = vld [vmem:[#allocation2 + $0x98] sm:$0xff]
    %v2033 = vld [vmem:[#allocation2 + $0xa0] sm:$0xff]
    %v2034 = vld [vmem:[#allocation2 + $0xa8] sm:$0xff]
    %v2035 = vld [vmem:[#allocation2 + $0xb0] sm:$0xff]
    %v2036 = vld [vmem:[#allocation2 + $0xb8] sm:$0xff]
    %v2037 = vld [vmem:[#allocation2 + $0xc0] sm:$0xff]
    %v2038 = vld [vmem:[#allocation2 + $0xc8] sm:$0xff]
    %v2039 = vld [vmem:[#allocation2 + $0xd0] sm:$0xff]
    %v2040 = vld [vmem:[#allocation2 + $0xd8] sm:$0xff]
    %v2041 = vld [vmem:[#allocation2 + $0xe0] sm:$0xff]
    %v2042 = vld [vmem:[#allocation2 + $0xe8] sm:$0xff]
    %v2043 = vld [vmem:[#allocation2 + $0xf0] sm:$0xff]
    %v2044 = vld [vmem:[#allocation2 + $0xf8] sm:$0xff]
    %v2045 = vld [vmem:[#allocation9] sm:$0xf]
    %v2046 = vld [vmem:[#allocation9 + $0x4] sm:$0xf]
    %v2047 = vld [vmem:[#allocation9 + $0x8] sm:$0xf]
    %v2048 = vld [vmem:[#allocation9 + $0xc] sm:$0xf]
    %v2049 = vld [vmem:[#allocation9 + $0x10] sm:$0xf]
    %v2050 = vld [vmem:[#allocation9 + $0x14] sm:$0xf]
    %v2051 = vld [vmem:[#allocation9 + $0x18] sm:$0xf]
    %v2052 = vld [vmem:[#allocation9 + $0x1c] sm:$0xf]
    %v2053 = vld [vmem:[#allocation9 + $0x20] sm:$0xf]
    %v2054 = vld [vmem:[#allocation9 + $0x24] sm:$0xf]
    %v2055 = vld [vmem:[#allocation9 + $0x28] sm:$0xf]
    %v2056 = vld [vmem:[#allocation9 + $0x2c] sm:$0xf]
    %v2057 = vld [vmem:[#allocation9 + $0x30] sm:$0xf]
    %v2058 = vld [vmem:[#allocation9 + $0x34] sm:$0xf]
    %v2059 = vld [vmem:[#allocation9 + $0x38] sm:$0xf]
    %v2060 = vld [vmem:[#allocation9 + $0x3c] sm:$0xf]
    %v2061 = vld [vmem:[#allocation9 + $0x40] sm:$0xf]
    %v2062 = vld [vmem:[#allocation9 + $0x44] sm:$0xf]
    %v2063 = vld [vmem:[#allocation9 + $0x48] sm:$0xf]
    %v2064 = vld [vmem:[#allocation9 + $0x4c] sm:$0xf]
    %v2065 = vld [vmem:[#allocation9 + $0x50] sm:$0xf]
    %v2066 = vld [vmem:[#allocation9 + $0x54] sm:$0xf]
    %v2067 = vld [vmem:[#allocation9 + $0x58] sm:$0xf]
    %v2068 = vld [vmem:[#allocation9 + $0x5c] sm:$0xf]
    %v2069 = vld [vmem:[#allocation9 + $0x60] sm:$0xf]
    %v2070 = vld [vmem:[#allocation9 + $0x64] sm:$0xf]
    %v2071 = vld [vmem:[#allocation9 + $0x68] sm:$0xf]
    %v2072 = vld [vmem:[#allocation9 + $0x6c] sm:$0xf]
    %v2073 = vld [vmem:[#allocation9 + $0x70] sm:$0xf]
    %v2074 = vld [vmem:[#allocation9 + $0x74] sm:$0xf]
    %v2075 = vld [vmem:[#allocation9 + $0x78] sm:$0xf]
    %v2076 = vld [vmem:[#allocation9 + $0x7c] sm:$0xf]
    %v2077 = vld [vmem:[%s7] sm:$0x1]
    %v2079 = vlaneseq
    %v2080 = vshrl.u32 %v2079, 7
    %v2081 = vsub.s32 0, %v2080
    %v2082 = vrot.slane %v2077, %v2081
    %v2116 = vunpack.c.l.b16 %v2045
    %v2117 = vunpack.c.l.b16 %v2046
    %v2118 = vunpack.c.l.b16 %v2047
    %v2119 = vunpack.c.l.b16 %v2048
    %v2120 = vunpack.c.l.b16 %v2049
    %v2121 = vunpack.c.l.b16 %v2050
    %v2122 = vunpack.c.l.b16 %v2051
    %v2123 = vunpack.c.l.b16 %v2052
    %v2124 = vunpack.c.l.b16 %v2053
    %v2125 = vunpack.c.l.b16 %v2054
    %v2126 = vunpack.c.l.b16 %v2055
    %v2127 = vunpack.c.l.b16 %v2056
    %v2128 = vunpack.c.l.b16 %v2057
    %v2129 = vunpack.c.l.b16 %v2058
    %v2130 = vunpack.c.l.b16 %v2059
    %v2131 = vunpack.c.l.b16 %v2060
    %v2132 = vunpack.c.l.b16 %v2061
    %v2133 = vunpack.c.l.b16 %v2062
    %v2134 = vunpack.c.l.b16 %v2063
    %v2135 = vunpack.c.l.b16 %v2064
    %v2136 = vunpack.c.l.b16 %v2065
    %v2137 = vunpack.c.l.b16 %v2066
    %v2138 = vunpack.c.l.b16 %v2067
    %v2139 = vunpack.c.l.b16 %v2068
    %v2140 = vunpack.c.l.b16 %v2069
    %v2141 = vunpack.c.l.b16 %v2070
    %v2142 = vunpack.c.l.b16 %v2071
    %v2143 = vunpack.c.l.b16 %v2072
    %v2144 = vunpack.c.l.b16 %v2073
    %v2145 = vunpack.c.l.b16 %v2074
    %v2146 = vunpack.c.l.b16 %v2075
    %v2147 = vunpack.c.l.b16 %v2076
    %v2148 = vpack.c.b16 %v2117, %v2116
    %v2149 = vpack.c.b16 %v2119, %v2118
    %v2150 = vpack.c.b16 %v2121, %v2120
    %v2151 = vpack.c.b16 %v2123, %v2122
    %v2152 = vpack.c.b16 %v2125, %v2124
    %v2153 = vpack.c.b16 %v2127, %v2126
    %v2154 = vpack.c.b16 %v2129, %v2128
    %v2155 = vpack.c.b16 %v2131, %v2130
    %v2156 = vpack.c.b16 %v2133, %v2132
    %v2157 = vpack.c.b16 %v2135, %v2134
    %v2158 = vpack.c.b16 %v2137, %v2136
    %v2159 = vpack.c.b16 %v2139, %v2138
    %v2160 = vpack.c.b16 %v2141, %v2140
    %v2161 = vpack.c.b16 %v2143, %v2142
    %v2162 = vpack.c.b16 %v2145, %v2144
    %v2163 = vpack.c.b16 %v2147, %v2146
    %2180 = vmatprep.subr.bf16.mxu0 0
    %2181 = vmatpush1.bf16.msra.mxu0 %v2148
    %2182 = vmatprep.subr.bf16.mxu0 0
    %2183 = vmatpush1.bf16.msra.mxu0 %v2149
    %2184 = vmatprep.subr.bf16.mxu0 0
    %2185 = vmatpush1.bf16.msra.mxu0 %v2150
    %2186 = vmatprep.subr.bf16.mxu0 0
    %2187 = vmatpush1.bf16.msra.mxu0 %v2151
    %2188 = vmatprep.subr.bf16.mxu0 0
    %2189 = vmatpush1.bf16.msra.mxu0 %v2152
    %2190 = vmatprep.subr.bf16.mxu0 0
    %2191 = vmatpush1.bf16.msra.mxu0 %v2153
    %2192 = vmatprep.subr.bf16.mxu0 0
    %2193 = vmatpush1.bf16.msra.mxu0 %v2154
    %2194 = vmatprep.subr.bf16.mxu0 0
    %2195 = vmatpush1.bf16.msra.mxu0 %v2155
    %2196 = vmatprep.subr.bf16.mxu0 0
    %2197 = vmatpush1.bf16.msra.mxu0 %v2156
    %2198 = vmatprep.subr.bf16.mxu0 0
    %2199 = vmatpush1.bf16.msra.mxu0 %v2157
    %2200 = vmatprep.subr.bf16.mxu0 0
    %2201 = vmatpush1.bf16.msra.mxu0 %v2158
    %2202 = vmatprep.subr.bf16.mxu0 0
    %2203 = vmatpush1.bf16.msra.mxu0 %v2159
    %2204 = vmatprep.subr.bf16.mxu0 0
    %2205 = vmatpush1.bf16.msra.mxu0 %v2160
    %2206 = vmatprep.subr.bf16.mxu0 0
    %2207 = vmatpush1.bf16.msra.mxu0 %v2161
    %2208 = vmatprep.subr.bf16.mxu0 0
    %2209 = vmatpush1.bf16.msra.mxu0 %v2162
    %2210 = vmatprep.subr.bf16.mxu0 0
    %2211 = vmatpush1.bf16.msra.mxu0 %v2163
    %2212 = vmatprep.mubr.bf16.mxu0 %v2014
    %2213 = vmatmul.mubr.bf16.gmra.mrb[0].mxu0 %v2013
    %v2214 = vpop.f32.mrb[0].mxu0
    %v2215 = vadd.f32 %v2082, %v2214
    %v2216 = vpop.f32.mrb[0].mxu0
    %v2217 = vpop.f32.mrb[0].mxu0
    %v2218 = vadd.f32 %v2082, %v2217
    %v2219 = vpop.f32.mrb[0].mxu0
    %2220 = vmatprep.mubr.bf16.mxu0 %v2016
    %2221 = vmatmul.mubr.bf16.gmra.mrb[0].mxu0 %v2015
    %v2222 = vpop.f32.mrb[0].mxu0
    %v2223 = vadd.f32 %v2082, %v2222
    %v2224 = vpop.f32.mrb[0].mxu0
    %v2225 = vpop.f32.mrb[0].mxu0
    %v2226 = vadd.f32 %v2082, %v2225
    %v2227 = vpop.f32.mrb[0].mxu0
    %2228 = vmatprep.mubr.bf16.mxu0 %v2018
    %2229 = vmatmul.mubr.bf16.gmra.mrb[0].mxu0 %v2017
    %v2230 = vpop.f32.mrb[0].mxu0
    %v2231 = vadd.f32 %v2082, %v2230
    %v2232 = vpop.f32.mrb[0].mxu0
    %v2233 = vpop.f32.mrb[0].mxu0
    %v2234 = vadd.f32 %v2082, %v2233
    %v2235 = vpop.f32.mrb[0].mxu0
    %2236 = vmatprep.mubr.bf16.mxu0 %v2020
    %2237 = vmatmul.mubr.bf16.gmra.mrb[0].mxu0 %v2019
    %v2238 = vpop.f32.mrb[0].mxu0
    %v2239 = vadd.f32 %v2082, %v2238
    %v2240 = vpop.f32.mrb[0].mxu0
    %v2241 = vpop.f32.mrb[0].mxu0
    %v2242 = vadd.f32 %v2082, %v2241
    %v2243 = vpop.f32.mrb[0].mxu0
    %2244 = vmatprep.mubr.bf16.mxu0 %v2022
    %2245 = vmatmul.mubr.bf16.gmra.mrb[0].mxu0 %v2021
    %v2246 = vpop.f32.mrb[0].mxu0
    %v2247 = vadd.f32 %v2082, %v2246
    %v2248 = vpop.f32.mrb[0].mxu0
    %v2249 = vpop.f32.mrb[0].mxu0
    %v2250 = vadd.f32 %v2082, %v2249
    %v2251 = vpop.f32.mrb[0].mxu0
    %2252 = vmatprep.mubr.bf16.mxu0 %v2024
    %2253 = vmatmul.mubr.bf16.gmra.mrb[0].mxu0 %v2023
    %v2254 = vpop.f32.mrb[0].mxu0
    %v2255 = vadd.f32 %v2082, %v2254
    %v2256 = vpop.f32.mrb[0].mxu0
    %v2257 = vpop.f32.mrb[0].mxu0
    %v2258 = vadd.f32 %v2082, %v2257
    %v2259 = vpop.f32.mrb[0].mxu0
    %2260 = vmatprep.mubr.bf16.mxu0 %v2026
    %2261 = vmatmul.mubr.bf16.gmra.mrb[0].mxu0 %v2025
    %v2262 = vpop.f32.mrb[0].mxu0
    %v2263 = vadd.f32 %v2082, %v2262
    %v2264 = vpop.f32.mrb[0].mxu0
    %v2265 = vpop.f32.mrb[0].mxu0
    %v2266 = vadd.f32 %v2082, %v2265
    %v2267 = vpop.f32.mrb[0].mxu0
    %2268 = vmatprep.mubr.bf16.mxu0 %v2028
    %2269 = vmatmul.mubr.bf16.gmra.mrb[0].mxu0 %v2027
    %v2270 = vpop.f32.mrb[0].mxu0
    %v2271 = vadd.f32 %v2082, %v2270
    %v2272 = vpop.f32.mrb[0].mxu0
    %v2273 = vpop.f32.mrb[0].mxu0
    %v2274 = vadd.f32 %v2082, %v2273
    %v2275 = vpop.f32.mrb[0].mxu0
    %2276 = vmatprep.mubr.bf16.mxu0 %v2030
    %2277 = vmatmul.mubr.bf16.gmra.mrb[0].mxu0 %v2029
    %v2278 = vpop.f32.mrb[0].mxu0
    %v2279 = vadd.f32 %v2082, %v2278
    %v2280 = vpop.f32.mrb[0].mxu0
    %v2281 = vpop.f32.mrb[0].mxu0
    %v2282 = vadd.f32 %v2082, %v2281
    %v2283 = vpop.f32.mrb[0].mxu0
    %2284 = vmatprep.mubr.bf16.mxu0 %v2032
    %2285 = vmatmul.mubr.bf16.gmra.mrb[0].mxu0 %v2031
    %v2286 = vpop.f32.mrb[0].mxu0
    %v2287 = vadd.f32 %v2082, %v2286
    %v2288 = vpop.f32.mrb[0].mxu0
    %v2289 = vpop.f32.mrb[0].mxu0
    %v2290 = vadd.f32 %v2082, %v2289
    %v2291 = vpop.f32.mrb[0].mxu0
    %2292 = vmatprep.mubr.bf16.mxu0 %v2034
    %2293 = vmatmul.mubr.bf16.gmra.mrb[0].mxu0 %v2033
    %v2294 = vpop.f32.mrb[0].mxu0
    %v2295 = vadd.f32 %v2082, %v2294
    %v2296 = vpop.f32.mrb[0].mxu0
    %v2297 = vpop.f32.mrb[0].mxu0
    %v2298 = vadd.f32 %v2082, %v2297
    %v2299 = vpop.f32.mrb[0].mxu0
    %2300 = vmatprep.mubr.bf16.mxu0 %v2036
    %2301 = vmatmul.mubr.bf16.gmra.mrb[0].mxu0 %v2035
    %v2302 = vpop.f32.mrb[0].mxu0
    %v2303 = vadd.f32 %v2082, %v2302
    %v2304 = vpop.f32.mrb[0].mxu0
    %v2305 = vpop.f32.mrb[0].mxu0
    %v2306 = vadd.f32 %v2082, %v2305
    %v2307 = vpop.f32.mrb[0].mxu0
    %2308 = vmatprep.mubr.bf16.mxu0 %v2038
    %2309 = vmatmul.mubr.bf16.gmra.mrb[0].mxu0 %v2037
    %v2310 = vpop.f32.mrb[0].mxu0
    %v2311 = vadd.f32 %v2082, %v2310
    %v2312 = vpop.f32.mrb[0].mxu0
    %v2313 = vpop.f32.mrb[0].mxu0
    %v2314 = vadd.f32 %v2082, %v2313
    %v2315 = vpop.f32.mrb[0].mxu0
    %2316 = vmatprep.mubr.bf16.mxu0 %v2040
    %2317 = vmatmul.mubr.bf16.gmra.mrb[0].mxu0 %v2039
    %v2318 = vpop.f32.mrb[0].mxu0
    %v2319 = vadd.f32 %v2082, %v2318
    %v2320 = vpop.f32.mrb[0].mxu0
    %v2321 = vpop.f32.mrb[0].mxu0
    %v2322 = vadd.f32 %v2082, %v2321
    %v2323 = vpop.f32.mrb[0].mxu0
    %2324 = vmatprep.mubr.bf16.mxu0 %v2042
    %2325 = vmatmul.mubr.bf16.gmra.mrb[0].mxu0 %v2041
    %v2326 = vpop.f32.mrb[0].mxu0
    %v2327 = vadd.f32 %v2082, %v2326
    %v2328 = vpop.f32.mrb[0].mxu0
    %v2329 = vpop.f32.mrb[0].mxu0
    %v2330 = vadd.f32 %v2082, %v2329
    %v2331 = vpop.f32.mrb[0].mxu0
    %2332 = vmatprep.mubr.bf16.mxu0 %v2044
    %2333 = vmatmul.mubr.bf16.gmra.mrb[0].mxu0 %v2043
    %v2334 = vpop.f32.mrb[0].mxu0
    %v2335 = vadd.f32 %v2082, %v2334
    %v2336 = vpop.f32.mrb[0].mxu0
    %v2337 = vpop.f32.mrb[0].mxu0
    %v2338 = vadd.f32 %v2082, %v2337
    %v2339 = vpop.f32.mrb[0].mxu0
    %2340 = vdwg.mxu0
    %2341 = vst [vmem:[#allocation11] sm:$0xff] %v2215
    %2342 = vst [vmem:[#allocation11 + $0x8] sm:$0xff] %v2218
    %2343 = vst [vmem:[#allocation11 + $0x10] sm:$0xff] %v2223
    %2344 = vst [vmem:[#allocation11 + $0x18] sm:$0xff] %v2226
    %2345 = vst [vmem:[#allocation11 + $0x20] sm:$0xff] %v2231
    %2346 = vst [vmem:[#allocation11 + $0x28] sm:$0xff] %v2234
    %2347 = vst [vmem:[#allocation11 + $0x30] sm:$0xff] %v2239
    %2348 = vst [vmem:[#allocation11 + $0x38] sm:$0xff] %v2242
    %2349 = vst [vmem:[#allocation11 + $0x40] sm:$0xff] %v2247
    %2350 = vst [vmem:[#allocation11 + $0x48] sm:$0xff] %v2250
    %2351 = vst [vmem:[#allocation11 + $0x50] sm:$0xff] %v2255
    %2352 = vst [vmem:[#allocation11 + $0x58] sm:$0xff] %v2258
    %2353 = vst [vmem:[#allocation11 + $0x60] sm:$0xff] %v2263
    %2354 = vst [vmem:[#allocation11 + $0x68] sm:$0xff] %v2266
    %2355 = vst [vmem:[#allocation11 + $0x70] sm:$0xff] %v2271
    %2356 = vst [vmem:[#allocation11 + $0x78] sm:$0xff] %v2274
    %2357 = vst [vmem:[#allocation11 + $0x80] sm:$0xff] %v2279
    %2358 = vst [vmem:[#allocation11 + $0x88] sm:$0xff] %v2282
    %2359 = vst [vmem:[#allocation11 + $0x90] sm:$0xff] %v2287
    %2360 = vst [vmem:[#allocation11 + $0x98] sm:$0xff] %v2290
    %2361 = vst [vmem:[#allocation11 + $0xa0] sm:$0xff] %v2295
    %2362 = vst [vmem:[#allocation11 + $0xa8] sm:$0xff] %v2298
    %2363 = vst [vmem:[#allocation11 + $0xb0] sm:$0xff] %v2303
    %2364 = vst [vmem:[#allocation11 + $0xb8] sm:$0xff] %v2306
    %2365 = vst [vmem:[#allocation11 + $0xc0] sm:$0xff] %v2311
    %2366 = vst [vmem:[#allocation11 + $0xc8] sm:$0xff] %v2314
    %2367 = vst [vmem:[#allocation11 + $0xd0] sm:$0xff] %v2319
    %2368 = vst [vmem:[#allocation11 + $0xd8] sm:$0xff] %v2322
    %2369 = vst [vmem:[#allocation11 + $0xe0] sm:$0xff] %v2327
    %2370 = vst [vmem:[#allocation11 + $0xe8] sm:$0xff] %v2330
    %2371 = vst [vmem:[#allocation11 + $0xf0] sm:$0xff] %v2335
    %2372 = vst [vmem:[#allocation11 + $0xf8] sm:$0xff] %v2338
    // Predicated region
    $region50: #{tpu_custom_call.1} parent=1 // pred_check
      _
    $region51: #{tpu_custom_call.1} parent=1 // pred_check_branch
      %2374 = sbr.rel (0) target = $region53
    $region52: #{tpu_custom_call.1} parent=1 // pred_region
      %s2376 = ssub.s32 4096, 4096
      %2377 = vsyncadd [#allocation5], %s2376
      %s2378 = sshll.u32 [#allocation11], 4
      %s2379 = int_to_ptr.vmem [resolvable:$true] %s2378
      %2384 = dma.vmem_to_hbm [thread:$0]  %s2379, 4096, %s8, [#allocation5], 128, 128, 8
    $region53: #{tpu_custom_call.1} parent=1 // pred_fallthru
      _
    // Predicated region
    $region54: #{tpu_custom_call.1} parent=1 // pred_check
      _
    $region55: #{tpu_custom_call.1} parent=1 // pred_check_branch
      %2386 = sbr.rel (0) target = $region57
    $region56: #{tpu_custom_call.1} parent=1 // pred_region
      %2387 = dma.done [#allocation5], 4096
    $region57: #{tpu_custom_call.1} parent=1 // pred_fallthru
      _
    %2388 = vsyncpa [#allocation4], 1
    %2389 = vsyncpa [#allocation7], 1
    %2390 = vsyncpa [#allocation10], 1
    %2391 = vsyncpa [#allocation5], 1

</llo_original>
